<compile_context>
chip_gen: v5e
topology: v5e:2x2
jax: 0.10.0
libtpu: 0.0.40
codegen_flags: <defaults>
</compile_context>

<pallas_src>
import functools
import math
from typing import NamedTuple, Optional

import jax
import jax.numpy as jnp
from jax.experimental import pallas as pl
from jax.experimental.pallas import tpu as pltpu

_LANES = 128
_ROW_TILE_VMEM_BUDGET = 24 * 1024 * 1024   # double-buffered (x + out) row tiles
_PACKED_WEIGHT_BUDGET = 4 * 1024 * 1024    # kron'd bf16 weights must fit, else un-packed
_MAX_ROW_TILE = 16384
_VMEM_LIMIT_BYTES = 48 * 1024 * 1024       # > 32 MiB scoped default, < v7x 64 MiB physical


def _round_up(n, m):
    return ((n + m - 1) // m) * m


def _mlp_kernel(x_ref, w1_ref, b1_ref, w2_ref, b2_ref, o_ref):
    """out = ReLU(x @ W1 + b1) @ W2 + b2 on one row tile (f32 MXU accumulation)."""
    x = x_ref[...].astype(jnp.bfloat16)        # in-kernel cast: no wrapper-side copy of x
    h = jnp.dot(x, w1_ref[...], preferred_element_type=jnp.float32)
    h = jnp.maximum(h + b1_ref[...], 0.0)      # activation = ReLU, bias add in f32
    out = jnp.dot(h.astype(jnp.bfloat16), w2_ref[...],
                  preferred_element_type=jnp.float32) + b2_ref[...]
    # Output kept f32 for parity with the torch module; flip to bf16 if downstream allows.
    o_ref[...] = out.astype(o_ref.dtype)


class AppnpParams(NamedTuple):
    # un-packed weights (bf16 matrices, f32 row-vector biases)
    w1: jax.Array
    b1: jax.Array
    w2: jax.Array
    b2: jax.Array
    # lane-dense packed variants kron(I_pack, W); None when packing is infeasible
    pack: int
    w1p: Optional[jax.Array]
    b1p: Optional[jax.Array]
    w2p: Optional[jax.Array]
    b2p: Optional[jax.Array]


def prepare_params(w1, b1, w2, b2, *, packed_weight_budget=_PACKED_WEIGHT_BUDGET):
    """One-time weight preparation (outside the per-call hot path)."""
    F, H = w1.shape
    C = w2.shape[1]
    w1b = w1.astype(jnp.bfloat16)
    w2b = w2.astype(jnp.bfloat16)
    b1r = b1.astype(jnp.float32).reshape(1, H)
    b2r = b2.astype(jnp.float32).reshape(1, C)

    pack = _LANES // math.gcd(C, _LANES)       # rows packed per lane-dense output row
    packed_bytes = 2 * pack * pack * (F * H + H * C)   # bf16 kron'd weights
    if pack > 1 and packed_bytes <= packed_weight_budget:
        eye = jnp.eye(pack, dtype=jnp.bfloat16)
        w1p = jnp.kron(eye, w1b)               # (pack*F, pack*H), block-diagonal
        w2p = jnp.kron(eye, w2b)               # (pack*H, pack*C), pack*C % 128 == 0
        b1p = jnp.tile(b1r, (1, pack))
        b2p = jnp.tile(b2r, (1, pack))
    else:
        pack, w1p, b1p, w2p, b2p = 1, None, None, None, None
    return AppnpParams(w1b, b1r, w2b, b2r, pack, w1p, b1p, w2p, b2p)


def _choose_row_tile(n_rows, in_cols, out_cols):
    # VMEM per row: double-buffered f32 input tile + f32 output tile (lanes pad to 128).
    per_row = 2 * 4 * (_round_up(in_cols, _LANES) + _round_up(out_cols, _LANES))
    tile = max(16, _ROW_TILE_VMEM_BUDGET // per_row)
    tile = min(tile, _MAX_ROW_TILE)
    tile = (tile // 16) * 16
    if tile >= n_rows:
        if n_rows >= 32:
            # Split into >=2 blocks so the "parallel" grid axis can shard across v7x's
            # two TensorCores (megacore).
            tile = min(_round_up(pl.cdiv(n_rows, 2), 16), n_rows)
        else:
            tile = n_rows
    return tile


@functools.partial(jax.jit, static_argnames=("pack", "row_tile", "single_buffer_weights"))
def _run_mlp(x, w1, b1, w2, b2, *, pack, row_tile, single_buffer_weights):
    N, F = x.shape
    x2d = x.reshape(N // pack, pack * F)       # row-major dim-merge: free view, no copy
    n_rows, in_cols = x2d.shape
    hid_cols = w1.shape[1]
    out_cols = w2.shape[1]

    grid = (pl.cdiv(n_rows, row_tile),)        # ragged tail handled by Pallas clamping

    # Weights/biases have constant index maps; single-buffer them to save VMEM.
    w_mode = dict(pipeline_mode=pl.Buffered(1)) if single_buffer_weights else {}

    flops = 2 * n_rows * (in_cols * hid_cols + hid_cols * out_cols)
    bytes_accessed = (x2d.size * x2d.dtype.itemsize + n_rows * out_cols * 4
                      + w1.size * 2 + w2.size * 2 + b1.size * 4 + b2.size * 4)

    out2d = pl.pallas_call(
        _mlp_kernel,
        out_shape=jax.ShapeDtypeStruct((n_rows, out_cols), jnp.float32),
        grid_spec=pltpu.PrefetchScalarGridSpec(
            num_scalar_prefetch=0,
            grid=grid,
            in_specs=[
                pl.BlockSpec((row_tile, in_cols), lambda i: (i, 0)),
                pl.BlockSpec(w1.shape, lambda i: (0, 0), **w_mode),
                pl.BlockSpec(b1.shape, lambda i: (0, 0), **w_mode),
                pl.BlockSpec(w2.shape, lambda i: (0, 0), **w_mode),
                pl.BlockSpec(b2.shape, lambda i: (0, 0), **w_mode),
            ],
            out_specs=pl.BlockSpec((row_tile, out_cols), lambda i: (i, 0)),
        ),
        compiler_params=pltpu.CompilerParams(
            dimension_semantics=("parallel",),
            vmem_limit_bytes=_VMEM_LIMIT_BYTES,
        ),
        cost_estimate=pl.CostEstimate(
            flops=flops, transcendentals=0, bytes_accessed=bytes_accessed),
    )(x2d, w1, b1, w2, b2)

    return out2d.reshape(N, out_cols // pack)


def appnp_forward(x, params: AppnpParams, *, force_unpacked=False):
    """APPNP_Paper forward (eval, num_layers=0): ReLU(x @ W1 + b1) @ W2 + b2 -> [N, C] f32."""
    N, F = x.shape
    use_packed = (not force_unpacked) and params.pack > 1 and (N % params.pack == 0)
    if use_packed:
        pack = params.pack
        n_rows, in_cols, out_cols = N // pack, pack * F, params.w2p.shape[1]
        weights = (params.w1p, params.b1p, params.w2p, params.b2p)
    else:
        pack = 1
        n_rows, in_cols, out_cols = N, F, params.w2.shape[1]
        weights = (params.w1, params.b1, params.w2, params.b2)
    row_tile = _choose_row_tile(n_rows, in_cols, out_cols)
    try:
        return _run_mlp(x, *weights, pack=pack, row_tile=row_tile,
                        single_buffer_weights=True)
    except Exception:
        # Fallback if this JAX build rejects pipeline_mode=pl.Buffered(1) on inputs.
        return _run_mlp(x, *weights, pack=pack, row_tile=row_tile,
                        single_buffer_weights=False)


def _torch_linear_init(key, fan_in, fan_out):
    """torch.nn.Linear default init: U(-1/sqrt(fan_in), 1/sqrt(fan_in))."""
    kw, kb = jax.random.split(key)
    bound = 1.0 / math.sqrt(fan_in)
    # stored transposed relative to torch ([fan_in, fan_out]) so the kernel does x @ W
    w = jax.random.uniform(kw, (fan_in, fan_out), jnp.float32, -bound, bound)
    b = jax.random.uniform(kb, (fan_out,), jnp.float32, -bound, bound)
    return w, b


def _reference_bf16(x, w1, b1, w2, b2):
    h = jnp.dot(x.astype(jnp.bfloat16), w1.astype(jnp.bfloat16),
                preferred_element_type=jnp.float32)
    h = jnp.maximum(h + b1, 0.0)
    return jnp.dot(h.astype(jnp.bfloat16), w2.astype(jnp.bfloat16),
                   preferred_element_type=jnp.float32) + b2


if __name__ == "__main__":
    # Small shapes consistent with the module: N nodes, features_dim, hidden_dim, classes.
    N, features_dim, hidden_dim, num_classes = 128, 16, 32, 8

    key = jax.random.PRNGKey(0)
    kx, k1, k2 = jax.random.split(key, 3)
    x = jax.random.normal(kx, (N, features_dim), jnp.float32)
    w1, b1 = _torch_linear_init(k1, features_dim, hidden_dim)   # input_fcs
    w2, b2 = _torch_linear_init(k2, hidden_dim, num_classes)    # output_fcs

    params = prepare_params(w1, b1, w2, b2)      # one-time weight prep (outside hot path)

    # 1) default path (lane-dense packed: N % 16 == 0, packed weights tiny).
    out = jax.block_until_ready(appnp_forward(x, params))
    assert out.shape == (N, num_classes)

    ref_bf16 = _reference_bf16(x, w1, b1, w2, b2)
    ref_f32 = jnp.maximum(x @ w1 + b1, 0.0) @ w2 + b2
    assert jnp.allclose(out, ref_bf16, atol=2e-3, rtol=2e-3), "packed: mismatch vs bf16 ref"
    assert jnp.allclose(out, ref_f32, atol=5e-2, rtol=5e-2), "packed: mismatch vs f32 ref"

    # 2) un-packed path (ragged N % 16 != 0; also exercises edge-block clamping).
    Nr = N - 7
    out_u = jax.block_until_ready(appnp_forward(x[:Nr], params))
    assert out_u.shape == (Nr, num_classes)
    assert jnp.allclose(out_u, ref_bf16[:Nr], atol=2e-3, rtol=2e-3), "unpacked: mismatch"

    print("KERNEL_OK")
</pallas_src>

<mosaic_0001>
module attributes {stable_mosaic.version = 11 : i64} {
  func.func @_mlp_kernel(%arg0: i32, %arg1: memref<8x256xf32, #tpu.memory_space<vmem>>, %arg2: memref<256x512xbf16, #tpu.memory_space<vmem>>, %arg3: memref<1x512xf32, #tpu.memory_space<vmem>>, %arg4: memref<512x128xbf16, #tpu.memory_space<vmem>>, %arg5: memref<1x128xf32, #tpu.memory_space<vmem>>, %arg6: memref<8x128xf32, #tpu.memory_space<vmem>>) attributes {dimension_semantics = [#tpu.dimension_semantics<parallel>], iteration_bounds = array<i64: 1>, scalar_prefetch = 0 : i64, scratch_operands = 0 : i64, tpu.core_type = #tpu.core_type<tc>, window_params = [{transform_indices = @transform_0, window_bounds = array<i64: 8, 256>}, {pipeline_mode = #tpu.pipeline_mode<synchronous>, transform_indices = @transform_1, window_bounds = array<i64: 256, 512>}, {pipeline_mode = #tpu.pipeline_mode<synchronous>, transform_indices = @transform_2, window_bounds = array<i64: 1, 512>}, {pipeline_mode = #tpu.pipeline_mode<synchronous>, transform_indices = @transform_3, window_bounds = array<i64: 512, 128>}, {pipeline_mode = #tpu.pipeline_mode<synchronous>, transform_indices = @transform_4, window_bounds = array<i64: 1, 128>}, {transform_indices = @transform_5, window_bounds = array<i64: 8, 128>}]} {
    %c0 = arith.constant 0 : index
    %c0_0 = arith.constant 0 : index
    %0 = vector.load %arg1[%c0, %c0_0] : memref<8x256xf32, #tpu.memory_space<vmem>>, vector<8x256xf32>
    %1 = arith.truncf %0 : vector<8x256xf32> to vector<8x256xbf16>
    %c0_1 = arith.constant 0 : index
    %c0_2 = arith.constant 0 : index
    %2 = vector.load %arg2[%c0_1, %c0_2] : memref<256x512xbf16, #tpu.memory_space<vmem>>, vector<256x512xbf16>
    %cst = arith.constant dense<0.000000e+00> : vector<8x512xf32>
    %3 = tpu.matmul %1, %2, %cst {dimension_numbers = #tpu.dot_dimension_numbers<[1], [0], [0], [1], [0, 0, 1, 1], [], []>} : vector<8x256xbf16>, vector<256x512xbf16>, vector<8x512xf32> -> vector<8x512xf32>
    %c0_3 = arith.constant 0 : index
    %c0_4 = arith.constant 0 : index
    %4 = vector.load %arg3[%c0_3, %c0_4] : memref<1x512xf32, #tpu.memory_space<vmem>>, vector<1x512xf32>
    %5 = vector.broadcast %4 : vector<1x512xf32> to vector<8x512xf32>
    %6 = arith.addf %3, %5 : vector<8x512xf32>
    %cst_5 = arith.constant 0.000000e+00 : f32
    %7 = vector.broadcast %cst_5 : f32 to vector<8x512xf32>
    %8 = arith.maximumf %6, %7 : vector<8x512xf32>
    %9 = arith.truncf %8 : vector<8x512xf32> to vector<8x512xbf16>
    %c0_6 = arith.constant 0 : index
    %c0_7 = arith.constant 0 : index
    %10 = vector.load %arg4[%c0_6, %c0_7] : memref<512x128xbf16, #tpu.memory_space<vmem>>, vector<512x128xbf16>
    %cst_8 = arith.constant dense<0.000000e+00> : vector<8x128xf32>
    %11 = tpu.matmul %9, %10, %cst_8 {dimension_numbers = #tpu.dot_dimension_numbers<[1], [0], [0], [1], [0, 0, 1, 1], [], []>} : vector<8x512xbf16>, vector<512x128xbf16>, vector<8x128xf32> -> vector<8x128xf32>
    %c0_9 = arith.constant 0 : index
    %c0_10 = arith.constant 0 : index
    %12 = vector.load %arg5[%c0_9, %c0_10] : memref<1x128xf32, #tpu.memory_space<vmem>>, vector<1x128xf32>
    %13 = vector.broadcast %12 : vector<1x128xf32> to vector<8x128xf32>
    %14 = arith.addf %11, %13 : vector<8x128xf32>
    %c0_11 = arith.constant 0 : index
    %c0_12 = arith.constant 0 : index
    %15 = vector.load %arg6[%c0_11, %c0_12] : memref<8x128xf32, #tpu.memory_space<vmem>>, vector<8x128xf32>
    tpu.vector_store %arg6[%c0_11, %c0_12], %14 {strides = array<i32>} : memref<8x128xf32, #tpu.memory_space<vmem>>, vector<8x128xf32>,
    return
  }
  func.func @transform_0(%arg0: i32) -> (i32, i32) {
    %c0_i32 = arith.constant 0 : i32
    %c0_i32_0 = arith.constant 0 : i32
    return %arg0, %c0_i32 : i32, i32
  }
  func.func @transform_1(%arg0: i32) -> (i32, i32) {
    %c0_i32 = arith.constant 0 : i32
    %c0_i32_0 = arith.constant 0 : i32
    %c0_i32_1 = arith.constant 0 : i32
    return %c0_i32, %c0_i32_0 : i32, i32
  }
  func.func @transform_2(%arg0: i32) -> (i32, i32) {
    %c0_i32 = arith.constant 0 : i32
    %c0_i32_0 = arith.constant 0 : i32
    %c0_i32_1 = arith.constant 0 : i32
    return %c0_i32, %c0_i32_0 : i32, i32
  }
  func.func @transform_3(%arg0: i32) -> (i32, i32) {
    %c0_i32 = arith.constant 0 : i32
    %c0_i32_0 = arith.constant 0 : i32
    %c0_i32_1 = arith.constant 0 : i32
    return %c0_i32, %c0_i32_0 : i32, i32
  }
  func.func @transform_4(%arg0: i32) -> (i32, i32) {
    %c0_i32 = arith.constant 0 : i32
    %c0_i32_0 = arith.constant 0 : i32
    %c0_i32_1 = arith.constant 0 : i32
    return %c0_i32, %c0_i32_0 : i32, i32
  }
  func.func @transform_5(%arg0: i32) -> (i32, i32) {
    %c0_i32 = arith.constant 0 : i32
    %c0_i32_0 = arith.constant 0 : i32
    return %arg0, %c0_i32 : i32, i32
  }
}

module attributes {stable_mosaic.version = 11 : i64} {
  func.func @_mlp_kernel(%arg0: i32, %arg1: memref<8x256xf32, #tpu.memory_space<vmem>>, %arg2: memref<256x512xbf16, #tpu.memory_space<vmem>>, %arg3: memref<1x512xf32, #tpu.memory_space<vmem>>, %arg4: memref<512x128xbf16, #tpu.memory_space<vmem>>, %arg5: memref<1x128xf32, #tpu.memory_space<vmem>>, %arg6: memref<8x128xf32, #tpu.memory_space<vmem>>) attributes {dimension_semantics = [#tpu.dimension_semantics<parallel>], iteration_bounds = array<i64: 1>, scalar_prefetch = 0 : i64, scratch_operands = 0 : i64, tpu.core_type = #tpu.core_type<tc>, window_params = [{transform_indices = @transform_0, window_bounds = array<i64: 8, 256>}, {pipeline_mode = #tpu.pipeline_mode<synchronous>, transform_indices = @transform_1, window_bounds = array<i64: 256, 512>}, {pipeline_mode = #tpu.pipeline_mode<synchronous>, transform_indices = @transform_2, window_bounds = array<i64: 1, 512>}, {pipeline_mode = #tpu.pipeline_mode<synchronous>, transform_indices = @transform_3, window_bounds = array<i64: 512, 128>}, {pipeline_mode = #tpu.pipeline_mode<synchronous>, transform_indices = @transform_4, window_bounds = array<i64: 1, 128>}, {transform_indices = @transform_5, window_bounds = array<i64: 8, 128>}]} {
    %c0 = arith.constant 0 : index
    %c0_0 = arith.constant 0 : index
    %0 = vector.load %arg1[%c0, %c0_0] : memref<8x256xf32, #tpu.memory_space<vmem>>, vector<8x256xf32>
    %1 = arith.truncf %0 : vector<8x256xf32> to vector<8x256xbf16>
    %c0_1 = arith.constant 0 : index
    %c0_2 = arith.constant 0 : index
    %2 = vector.load %arg2[%c0_1, %c0_2] : memref<256x512xbf16, #tpu.memory_space<vmem>>, vector<256x512xbf16>
    %cst = arith.constant dense<0.000000e+00> : vector<8x512xf32>
    %3 = tpu.matmul %1, %2, %cst {dimension_numbers = #tpu.dot_dimension_numbers<[1], [0], [0], [1], [0, 0, 1, 1], [], []>} : vector<8x256xbf16>, vector<256x512xbf16>, vector<8x512xf32> -> vector<8x512xf32>
    %c0_3 = arith.constant 0 : index
    %c0_4 = arith.constant 0 : index
    %4 = vector.load %arg3[%c0_3, %c0_4] : memref<1x512xf32, #tpu.memory_space<vmem>>, vector<1x512xf32>
    %5 = vector.broadcast %4 : vector<1x512xf32> to vector<8x512xf32>
    %6 = arith.addf %3, %5 : vector<8x512xf32>
    %cst_5 = arith.constant 0.000000e+00 : f32
    %7 = vector.broadcast %cst_5 : f32 to vector<8x512xf32>
    %8 = arith.maximumf %6, %7 : vector<8x512xf32>
    %9 = arith.truncf %8 : vector<8x512xf32> to vector<8x512xbf16>
    %c0_6 = arith.constant 0 : index
    %c0_7 = arith.constant 0 : index
    %10 = vector.load %arg4[%c0_6, %c0_7] : memref<512x128xbf16, #tpu.memory_space<vmem>>, vector<512x128xbf16>
    %cst_8 = arith.constant dense<0.000000e+00> : vector<8x128xf32>
    %11 = tpu.matmul %9, %10, %cst_8 {dimension_numbers = #tpu.dot_dimension_numbers<[1], [0], [0], [1], [0, 0, 1, 1], [], []>} : vector<8x512xbf16>, vector<512x128xbf16>, vector<8x128xf32> -> vector<8x128xf32>
    %c0_9 = arith.constant 0 : index
    %c0_10 = arith.constant 0 : index
    %12 = vector.load %arg5[%c0_9, %c0_10] : memref<1x128xf32, #tpu.memory_space<vmem>>, vector<1x128xf32>
    %13 = vector.broadcast %12 : vector<1x128xf32> to vector<8x128xf32>
    %14 = arith.addf %11, %13 : vector<8x128xf32>
    %c0_11 = arith.constant 0 : index
    %c0_12 = arith.constant 0 : index
    %15 = vector.load %arg6[%c0_11, %c0_12] : memref<8x128xf32, #tpu.memory_space<vmem>>, vector<8x128xf32>
    tpu.vector_store %arg6[%c0_11, %c0_12], %14 {strides = array<i32>} : memref<8x128xf32, #tpu.memory_space<vmem>>, vector<8x128xf32>,
    return
  }
  func.func @transform_0(%arg0: i32) -> (i32, i32) {
    %c0_i32 = arith.constant 0 : i32
    %c0_i32_0 = arith.constant 0 : i32
    return %arg0, %c0_i32 : i32, i32
  }
  func.func @transform_1(%arg0: i32) -> (i32, i32) {
    %c0_i32 = arith.constant 0 : i32
    %c0_i32_0 = arith.constant 0 : i32
    %c0_i32_1 = arith.constant 0 : i32
    return %c0_i32, %c0_i32_0 : i32, i32
  }
  func.func @transform_2(%arg0: i32) -> (i32, i32) {
    %c0_i32 = arith.constant 0 : i32
    %c0_i32_0 = arith.constant 0 : i32
    %c0_i32_1 = arith.constant 0 : i32
    return %c0_i32, %c0_i32_0 : i32, i32
  }
  func.func @transform_3(%arg0: i32) -> (i32, i32) {
    %c0_i32 = arith.constant 0 : i32
    %c0_i32_0 = arith.constant 0 : i32
    %c0_i32_1 = arith.constant 0 : i32
    return %c0_i32, %c0_i32_0 : i32, i32
  }
  func.func @transform_4(%arg0: i32) -> (i32, i32) {
    %c0_i32 = arith.constant 0 : i32
    %c0_i32_0 = arith.constant 0 : i32
    %c0_i32_1 = arith.constant 0 : i32
    return %c0_i32, %c0_i32_0 : i32, i32
  }
  func.func @transform_5(%arg0: i32) -> (i32, i32) {
    %c0_i32 = arith.constant 0 : i32
    %c0_i32_0 = arith.constant 0 : i32
    return %arg0, %c0_i32 : i32, i32
  }
}

</mosaic_0001>

<llo_original>
// kernel: _run_mlp.1
$region0: #{_run_mlp.1}
  #allocation0 [shape = 'u32[]', space=smem, size = 0x4, offset = 0x4, fixed_abs, tag = 'smem constant byte address 0x4 - core index']
  #allocation1 [shape = 'u32[72,128]{1,0:T(1,128)}', space=vmem, size = 0x9000, scoped, tag = 'internal scratch']
  %s0 = inlined_call_operand.vmem [shape: f32[8,256], index: 0, kind: input, shape index: {}]
  %s1 = inlined_call_operand.hbm [shape: bf16[256,512], index: 1, kind: input, shape index: {}]
  %s2 = inlined_call_operand.vmem [shape: f32[1,512], index: 2, kind: input, shape index: {}]
  %s3 = inlined_call_operand.vmem [shape: bf16[512,128], index: 3, kind: input, shape index: {}]
  %s4 = inlined_call_operand.vmem [shape: f32[1,128], index: 4, kind: input, shape index: {}]
  %s5 = inlined_call_operand.vmem [shape: f32[8,128], index: 5, kind: output, shape index: {}]
  %s6 = sld [smem:[#allocation0]]
  $region34: #{_run_mlp.1} parent=0
    _
  %s8 = ssub.s32 1, %s6
  %s9 = scalar_select 0, %s8, %s6
  $region1: #{_run_mlp.1} parent=0
    #allocation2 [shape = 'u8[262144]{0}', space=vmem, size = 0x40000, scoped, tag = 'input window, operand 1, single buffered']
    #allocation3 [shape = 's32[1]{0}', space=sflag, size = 0x4, scoped, tag = 'scoped memory for _run_mlp.1']
    %10 = vsyncpa [#allocation3], 0
    // Predicated region
    $region2: #{_run_mlp.1} parent=1 // pred_check
      _
    $region3: #{_run_mlp.1} parent=1 // pred_check_branch
      %12 = sbr.rel (0) target = $region5
    $region4: #{_run_mlp.1} parent=1 // pred_region
      _
    $region5: #{_run_mlp.1} parent=1 // pred_fallthru
      _
    // Predicated region
    $region6: #{_run_mlp.1} parent=1 // pred_check
      _
    $region7: #{_run_mlp.1} parent=1 // pred_check_branch
      %14 = sbr.rel (0) target = $region9
    $region8: #{_run_mlp.1} parent=1 // pred_region
      %16 = vsyncadd [#allocation3], 0
      %s17 = sshll.u32 %s1, 4
      %s18 = int_to_ptr.hbm [resolvable:$true] %s17
      %s19 = sshll.u32 [#allocation2], 4
      %s20 = int_to_ptr.vmem [resolvable:$true] %s19
      %25 = dma.hbm_to_vmem [thread:$0]  %s18, 8192, %s20, [#allocation3], 256, 256, 16
    $region9: #{_run_mlp.1} parent=1 // pred_fallthru
      _
    // Predicated region
    $region10: #{_run_mlp.1} parent=1 // pred_check
      _
    $region11: #{_run_mlp.1} parent=1 // pred_check_branch
      %27 = sbr.rel (0) target = $region13
    $region12: #{_run_mlp.1} parent=1 // pred_region
      _
    $region13: #{_run_mlp.1} parent=1 // pred_fallthru
      _
    // Predicated region
    $region14: #{_run_mlp.1} parent=1 // pred_check
      _
    $region15: #{_run_mlp.1} parent=1 // pred_check_branch
      %29 = sbr.rel (0) target = $region17
    $region16: #{_run_mlp.1} parent=1 // pred_region
      _
    $region17: #{_run_mlp.1} parent=1 // pred_fallthru
      _
    // Predicated region
    $region18: #{_run_mlp.1} parent=1 // pred_check
      _
    $region19: #{_run_mlp.1} parent=1 // pred_check_branch
      %31 = sbr.rel (0) target = $region21
    $region20: #{_run_mlp.1} parent=1 // pred_region
      _
    $region21: #{_run_mlp.1} parent=1 // pred_fallthru
      _
    // Predicated region
    $region22: #{_run_mlp.1} parent=1 // pred_check
      _
    $region23: #{_run_mlp.1} parent=1 // pred_check_branch
      %33 = sbr.rel (0) target = $region25
    $region24: #{_run_mlp.1} parent=1 // pred_region
      %35 = dma.done [#allocation3], 8192
    $region25: #{_run_mlp.1} parent=1 // pred_fallthru
      _
    %v36 = vld [vmem:[%s0] sm:$0xff]
    %v37 = vld [vmem:[%s0 + $0x8] sm:$0xff]
    %v38 = vpack.c.bf16 %v36, %v36
    %v39 = vpack.c.bf16 %v37, %v37
    %v40 = vld [vmem:[#allocation2] sm:$0xff]
    %v41 = vld [vmem:[#allocation2 + $0x8] sm:$0xff]
    %v42 = vld [vmem:[#allocation2 + $0x10] sm:$0xff]
    %v43 = vld [vmem:[#allocation2 + $0x18] sm:$0xff]
    %v44 = vld [vmem:[#allocation2 + $0x20] sm:$0xff]
    %v45 = vld [vmem:[#allocation2 + $0x28] sm:$0xff]
    %v46 = vld [vmem:[#allocation2 + $0x30] sm:$0xff]
    %v47 = vld [vmem:[#allocation2 + $0x38] sm:$0xff]
    %v48 = vld [vmem:[#allocation2 + $0x40] sm:$0xff]
    %v49 = vld [vmem:[#allocation2 + $0x48] sm:$0xff]
    %v50 = vld [vmem:[#allocation2 + $0x50] sm:$0xff]
    %v51 = vld [vmem:[#allocation2 + $0x58] sm:$0xff]
    %v52 = vld [vmem:[#allocation2 + $0x60] sm:$0xff]
    %v53 = vld [vmem:[#allocation2 + $0x68] sm:$0xff]
    %v54 = vld [vmem:[#allocation2 + $0x70] sm:$0xff]
    %v55 = vld [vmem:[#allocation2 + $0x78] sm:$0xff]
    %v56 = vld [vmem:[#allocation2 + $0x80] sm:$0xff]
    %v57 = vld [vmem:[#allocation2 + $0x88] sm:$0xff]
    %v58 = vld [vmem:[#allocation2 + $0x90] sm:$0xff]
    %v59 = vld [vmem:[#allocation2 + $0x98] sm:$0xff]
    %v60 = vld [vmem:[#allocation2 + $0xa0] sm:$0xff]
    %v61 = vld [vmem:[#allocation2 + $0xa8] sm:$0xff]
    %v62 = vld [vmem:[#allocation2 + $0xb0] sm:$0xff]
    %v63 = vld [vmem:[#allocation2 + $0xb8] sm:$0xff]
    %v64 = vld [vmem:[#allocation2 + $0xc0] sm:$0xff]
    %v65 = vld [vmem:[#allocation2 + $0xc8] sm:$0xff]
    %v66 = vld [vmem:[#allocation2 + $0xd0] sm:$0xff]
    %v67 = vld [vmem:[#allocation2 + $0xd8] sm:$0xff]
    %v68 = vld [vmem:[#allocation2 + $0xe0] sm:$0xff]
    %v69 = vld [vmem:[#allocation2 + $0xe8] sm:$0xff]
    %v70 = vld [vmem:[#allocation2 + $0xf0] sm:$0xff]
    %v71 = vld [vmem:[#allocation2 + $0xf8] sm:$0xff]
    %v72 = vld [vmem:[#allocation2 + $0x100] sm:$0xff]
    %v73 = vld [vmem:[#allocation2 + $0x108] sm:$0xff]
    %v74 = vld [vmem:[#allocation2 + $0x110] sm:$0xff]
    %v75 = vld [vmem:[#allocation2 + $0x118] sm:$0xff]
    %v76 = vld [vmem:[#allocation2 + $0x120] sm:$0xff]
    %v77 = vld [vmem:[#allocation2 + $0x128] sm:$0xff]
    %v78 = vld [vmem:[#allocation2 + $0x130] sm:$0xff]
    %v79 = vld [vmem:[#allocation2 + $0x138] sm:$0xff]
    %v80 = vld [vmem:[#allocation2 + $0x140] sm:$0xff]
    %v81 = vld [vmem:[#allocation2 + $0x148] sm:$0xff]
    %v82 = vld [vmem:[#allocation2 + $0x150] sm:$0xff]
    %v83 = vld [vmem:[#allocation2 + $0x158] sm:$0xff]
    %v84 = vld [vmem:[#allocation2 + $0x160] sm:$0xff]
    %v85 = vld [vmem:[#allocation2 + $0x168] sm:$0xff]
    %v86 = vld [vmem:[#allocation2 + $0x170] sm:$0xff]
    %v87 = vld [vmem:[#allocation2 + $0x178] sm:$0xff]
    %v88 = vld [vmem:[#allocation2 + $0x180] sm:$0xff]
    %v89 = vld [vmem:[#allocation2 + $0x188] sm:$0xff]
    %v90 = vld [vmem:[#allocation2 + $0x190] sm:$0xff]
    %v91 = vld [vmem:[#allocation2 + $0x198] sm:$0xff]
    %v92 = vld [vmem:[#allocation2 + $0x1a0] sm:$0xff]
    %v93 = vld [vmem:[#allocation2 + $0x1a8] sm:$0xff]
    %v94 = vld [vmem:[#allocation2 + $0x1b0] sm:$0xff]
    %v95 = vld [vmem:[#allocation2 + $0x1b8] sm:$0xff]
    %v96 = vld [vmem:[#allocation2 + $0x1c0] sm:$0xff]
    %v97 = vld [vmem:[#allocation2 + $0x1c8] sm:$0xff]
    %v98 = vld [vmem:[#allocation2 + $0x1d0] sm:$0xff]
    %v99 = vld [vmem:[#allocation2 + $0x1d8] sm:$0xff]
    %v100 = vld [vmem:[#allocation2 + $0x1e0] sm:$0xff]
    %v101 = vld [vmem:[#allocation2 + $0x1e8] sm:$0xff]
    %v102 = vld [vmem:[#allocation2 + $0x1f0] sm:$0xff]
    %v103 = vld [vmem:[#allocation2 + $0x1f8] sm:$0xff]
    %v104 = vld [vmem:[%s2] sm:$0xf]
    %v106 = vperm.slane %v104, 0
    %v107 = vperm.slane %v104, 1
    %v108 = vperm.slane %v104, 2
    %v109 = vperm.slane %v104, 3
    %v178 = vunpack.c.l.b16 %v40
    %v179 = vunpack.c.h.b16 %v40
    %v180 = vunpack.c.l.b16 %v41
    %v181 = vunpack.c.h.b16 %v41
    %v182 = vunpack.c.l.b16 %v42
    %v183 = vunpack.c.h.b16 %v42
    %v184 = vunpack.c.l.b16 %v43
    %v185 = vunpack.c.h.b16 %v43
    %v186 = vunpack.c.l.b16 %v44
    %v187 = vunpack.c.h.b16 %v44
    %v188 = vunpack.c.l.b16 %v45
    %v189 = vunpack.c.h.b16 %v45
    %v190 = vunpack.c.l.b16 %v46
    %v191 = vunpack.c.h.b16 %v46
    %v192 = vunpack.c.l.b16 %v47
    %v193 = vunpack.c.h.b16 %v47
    %v194 = vunpack.c.l.b16 %v48
    %v195 = vunpack.c.h.b16 %v48
    %v196 = vunpack.c.l.b16 %v49
    %v197 = vunpack.c.h.b16 %v49
    %v198 = vunpack.c.l.b16 %v50
    %v199 = vunpack.c.h.b16 %v50
    %v200 = vunpack.c.l.b16 %v51
    %v201 = vunpack.c.h.b16 %v51
    %v202 = vunpack.c.l.b16 %v52
    %v203 = vunpack.c.h.b16 %v52
    %v204 = vunpack.c.l.b16 %v53
    %v205 = vunpack.c.h.b16 %v53
    %v206 = vunpack.c.l.b16 %v54
    %v207 = vunpack.c.h.b16 %v54
    %v208 = vunpack.c.l.b16 %v55
    %v209 = vunpack.c.h.b16 %v55
    %v210 = vunpack.c.l.b16 %v56
    %v211 = vunpack.c.h.b16 %v56
    %v212 = vunpack.c.l.b16 %v57
    %v213 = vunpack.c.h.b16 %v57
    %v214 = vunpack.c.l.b16 %v58
    %v215 = vunpack.c.h.b16 %v58
    %v216 = vunpack.c.l.b16 %v59
    %v217 = vunpack.c.h.b16 %v59
    %v218 = vunpack.c.l.b16 %v60
    %v219 = vunpack.c.h.b16 %v60
    %v220 = vunpack.c.l.b16 %v61
    %v221 = vunpack.c.h.b16 %v61
    %v222 = vunpack.c.l.b16 %v62
    %v223 = vunpack.c.h.b16 %v62
    %v224 = vunpack.c.l.b16 %v63
    %v225 = vunpack.c.h.b16 %v63
    %v226 = vunpack.c.l.b16 %v64
    %v227 = vunpack.c.h.b16 %v64
    %v228 = vunpack.c.l.b16 %v65
    %v229 = vunpack.c.h.b16 %v65
    %v230 = vunpack.c.l.b16 %v66
    %v231 = vunpack.c.h.b16 %v66
    %v232 = vunpack.c.l.b16 %v67
    %v233 = vunpack.c.h.b16 %v67
    %v234 = vunpack.c.l.b16 %v68
    %v235 = vunpack.c.h.b16 %v68
    %v236 = vunpack.c.l.b16 %v69
    %v237 = vunpack.c.h.b16 %v69
    %v238 = vunpack.c.l.b16 %v70
    %v239 = vunpack.c.h.b16 %v70
    %v240 = vunpack.c.l.b16 %v71
    %v241 = vunpack.c.h.b16 %v71
    %v242 = vunpack.c.l.b16 %v72
    %v243 = vunpack.c.h.b16 %v72
    %v244 = vunpack.c.l.b16 %v73
    %v245 = vunpack.c.h.b16 %v73
    %v246 = vunpack.c.l.b16 %v74
    %v247 = vunpack.c.h.b16 %v74
    %v248 = vunpack.c.l.b16 %v75
    %v249 = vunpack.c.h.b16 %v75
    %v250 = vunpack.c.l.b16 %v76
    %v251 = vunpack.c.h.b16 %v76
    %v252 = vunpack.c.l.b16 %v77
    %v253 = vunpack.c.h.b16 %v77
    %v254 = vunpack.c.l.b16 %v78
    %v255 = vunpack.c.h.b16 %v78
    %v256 = vunpack.c.l.b16 %v79
    %v257 = vunpack.c.h.b16 %v79
    %v258 = vunpack.c.l.b16 %v80
    %v259 = vunpack.c.h.b16 %v80
    %v260 = vunpack.c.l.b16 %v81
    %v261 = vunpack.c.h.b16 %v81
    %v262 = vunpack.c.l.b16 %v82
    %v263 = vunpack.c.h.b16 %v82
    %v264 = vunpack.c.l.b16 %v83
    %v265 = vunpack.c.h.b16 %v83
    %v266 = vunpack.c.l.b16 %v84
    %v267 = vunpack.c.h.b16 %v84
    %v268 = vunpack.c.l.b16 %v85
    %v269 = vunpack.c.h.b16 %v85
    %v270 = vunpack.c.l.b16 %v86
    %v271 = vunpack.c.h.b16 %v86
    %v272 = vunpack.c.l.b16 %v87
    %v273 = vunpack.c.h.b16 %v87
    %v274 = vunpack.c.l.b16 %v88
    %v275 = vunpack.c.h.b16 %v88
    %v276 = vunpack.c.l.b16 %v89
    %v277 = vunpack.c.h.b16 %v89
    %v278 = vunpack.c.l.b16 %v90
    %v279 = vunpack.c.h.b16 %v90
    %v280 = vunpack.c.l.b16 %v91
    %v281 = vunpack.c.h.b16 %v91
    %v282 = vunpack.c.l.b16 %v92
    %v283 = vunpack.c.h.b16 %v92
    %v284 = vunpack.c.l.b16 %v93
    %v285 = vunpack.c.h.b16 %v93
    %v286 = vunpack.c.l.b16 %v94
    %v287 = vunpack.c.h.b16 %v94
    %v288 = vunpack.c.l.b16 %v95
    %v289 = vunpack.c.h.b16 %v95
    %v290 = vunpack.c.l.b16 %v96
    %v291 = vunpack.c.h.b16 %v96
    %v292 = vunpack.c.l.b16 %v97
    %v293 = vunpack.c.h.b16 %v97
    %v294 = vunpack.c.l.b16 %v98
    %v295 = vunpack.c.h.b16 %v98
    %v296 = vunpack.c.l.b16 %v99
    %v297 = vunpack.c.h.b16 %v99
    %v298 = vunpack.c.l.b16 %v100
    %v299 = vunpack.c.h.b16 %v100
    %v300 = vunpack.c.l.b16 %v101
    %v301 = vunpack.c.h.b16 %v101
    %v302 = vunpack.c.l.b16 %v102
    %v303 = vunpack.c.h.b16 %v102
    %v304 = vunpack.c.l.b16 %v103
    %v305 = vunpack.c.h.b16 %v103
    %v306 = vpack.c.b16 %v182, %v178
    %v307 = vpack.c.b16 %v183, %v179
    %v308 = vpack.c.b16 %v184, %v180
    %v309 = vpack.c.b16 %v185, %v181
    %v310 = vpack.c.b16 %v190, %v186
    %v311 = vpack.c.b16 %v191, %v187
    %v312 = vpack.c.b16 %v192, %v188
    %v313 = vpack.c.b16 %v193, %v189
    %v314 = vpack.c.b16 %v198, %v194
    %v315 = vpack.c.b16 %v199, %v195
    %v316 = vpack.c.b16 %v200, %v196
    %v317 = vpack.c.b16 %v201, %v197
    %v318 = vpack.c.b16 %v206, %v202
    %v319 = vpack.c.b16 %v207, %v203
    %v320 = vpack.c.b16 %v208, %v204
    %v321 = vpack.c.b16 %v209, %v205
    %v322 = vpack.c.b16 %v214, %v210
    %v323 = vpack.c.b16 %v215, %v211
    %v324 = vpack.c.b16 %v216, %v212
    %v325 = vpack.c.b16 %v217, %v213
    %v326 = vpack.c.b16 %v222, %v218
    %v327 = vpack.c.b16 %v223, %v219
    %v328 = vpack.c.b16 %v224, %v220
    %v329 = vpack.c.b16 %v225, %v221
    %v330 = vpack.c.b16 %v230, %v226
    %v331 = vpack.c.b16 %v231, %v227
    %v332 = vpack.c.b16 %v232, %v228
    %v333 = vpack.c.b16 %v233, %v229
    %v334 = vpack.c.b16 %v238, %v234
    %v335 = vpack.c.b16 %v239, %v235
    %v336 = vpack.c.b16 %v240, %v236
    %v337 = vpack.c.b16 %v241, %v237
    %v338 = vpack.c.b16 %v246, %v242
    %v339 = vpack.c.b16 %v247, %v243
    %v340 = vpack.c.b16 %v248, %v244
    %v341 = vpack.c.b16 %v249, %v245
    %v342 = vpack.c.b16 %v254, %v250
    %v343 = vpack.c.b16 %v255, %v251
    %v344 = vpack.c.b16 %v256, %v252
    %v345 = vpack.c.b16 %v257, %v253
    %v346 = vpack.c.b16 %v262, %v258
    %v347 = vpack.c.b16 %v263, %v259
    %v348 = vpack.c.b16 %v264, %v260
    %v349 = vpack.c.b16 %v265, %v261
    %v350 = vpack.c.b16 %v270, %v266
    %v351 = vpack.c.b16 %v271, %v267
    %v352 = vpack.c.b16 %v272, %v268
    %v353 = vpack.c.b16 %v273, %v269
    %v354 = vpack.c.b16 %v278, %v274
    %v355 = vpack.c.b16 %v279, %v275
    %v356 = vpack.c.b16 %v280, %v276
    %v357 = vpack.c.b16 %v281, %v277
    %v358 = vpack.c.b16 %v286, %v282
    %v359 = vpack.c.b16 %v287, %v283
    %v360 = vpack.c.b16 %v288, %v284
    %v361 = vpack.c.b16 %v289, %v285
    %v362 = vpack.c.b16 %v294, %v290
    %v363 = vpack.c.b16 %v295, %v291
    %v364 = vpack.c.b16 %v296, %v292
    %v365 = vpack.c.b16 %v297, %v293
    %v366 = vpack.c.b16 %v302, %v298
    %v367 = vpack.c.b16 %v303, %v299
    %v368 = vpack.c.b16 %v304, %v300
    %v369 = vpack.c.b16 %v305, %v301
    %434 = vmatpush.bf16.msra.mxu0 %v334
    %435 = vmatpush.bf16.msra.mxu0 %v330
    %436 = vmatpush.bf16.msra.mxu0 %v326
    %437 = vmatpush.bf16.msra.mxu0 %v322
    %438 = vmatpush.bf16.msra.mxu0 %v318
    %439 = vmatpush.bf16.msra.mxu0 %v314
    %440 = vmatpush.bf16.msra.mxu0 %v310
    %441 = vmatpush.bf16.msra.mxu0 %v306
    %442 = vmatmul.bf16.gmra.mxu0 %v38
    %v443 = vpop.f32.mrf.mxu0
    %v444 = vadd.f32 %v106, %v443
    %v445 = vpop.f32.mrf.mxu0
    %446 = vdwg.mxu0
    %447 = vmatpush.bf16.msra.mxu0 %v366
    %448 = vmatpush.bf16.msra.mxu0 %v362
    %449 = vmatpush.bf16.msra.mxu0 %v358
    %450 = vmatpush.bf16.msra.mxu0 %v354
    %451 = vmatpush.bf16.msra.mxu0 %v350
    %452 = vmatpush.bf16.msra.mxu0 %v346
    %453 = vmatpush.bf16.msra.mxu0 %v342
    %454 = vmatpush.bf16.msra.mxu0 %v338
    %455 = vmatmul.bf16.gmra.mxu0 %v39
    %v456 = vpop.f32.mrf.mxu0
    %v457 = vadd.f32 %v444, %v456
    %v458 = vpop.f32.mrf.mxu0
    %459 = vdwg.mxu0
    %460 = vmatpush.bf16.msra.mxu0 %v335
    %461 = vmatpush.bf16.msra.mxu0 %v331
    %462 = vmatpush.bf16.msra.mxu0 %v327
    %463 = vmatpush.bf16.msra.mxu0 %v323
    %464 = vmatpush.bf16.msra.mxu0 %v319
    %465 = vmatpush.bf16.msra.mxu0 %v315
    %466 = vmatpush.bf16.msra.mxu0 %v311
    %467 = vmatpush.bf16.msra.mxu0 %v307
    %468 = vmatmul.bf16.gmra.mxu0 %v38
    %v469 = vpop.f32.mrf.mxu0
    %v470 = vadd.f32 %v107, %v469
    %v471 = vpop.f32.mrf.mxu0
    %472 = vdwg.mxu0
    %473 = vmatpush.bf16.msra.mxu0 %v367
    %474 = vmatpush.bf16.msra.mxu0 %v363
    %475 = vmatpush.bf16.msra.mxu0 %v359
    %476 = vmatpush.bf16.msra.mxu0 %v355
    %477 = vmatpush.bf16.msra.mxu0 %v351
    %478 = vmatpush.bf16.msra.mxu0 %v347
    %479 = vmatpush.bf16.msra.mxu0 %v343
    %480 = vmatpush.bf16.msra.mxu0 %v339
    %481 = vmatmul.bf16.gmra.mxu0 %v39
    %v482 = vpop.f32.mrf.mxu0
    %v483 = vadd.f32 %v470, %v482
    %v484 = vpop.f32.mrf.mxu0
    %485 = vdwg.mxu0
    %486 = vmatpush.bf16.msra.mxu0 %v336
    %487 = vmatpush.bf16.msra.mxu0 %v332
    %488 = vmatpush.bf16.msra.mxu0 %v328
    %489 = vmatpush.bf16.msra.mxu0 %v324
    %490 = vmatpush.bf16.msra.mxu0 %v320
    %491 = vmatpush.bf16.msra.mxu0 %v316
    %492 = vmatpush.bf16.msra.mxu0 %v312
    %493 = vmatpush.bf16.msra.mxu0 %v308
    %494 = vmatmul.bf16.gmra.mxu0 %v38
    %v495 = vpop.f32.mrf.mxu0
    %v496 = vadd.f32 %v108, %v495
    %v497 = vpop.f32.mrf.mxu0
    %498 = vdwg.mxu0
    %499 = vmatpush.bf16.msra.mxu0 %v368
    %500 = vmatpush.bf16.msra.mxu0 %v364
    %501 = vmatpush.bf16.msra.mxu0 %v360
    %502 = vmatpush.bf16.msra.mxu0 %v356
    %503 = vmatpush.bf16.msra.mxu0 %v352
    %504 = vmatpush.bf16.msra.mxu0 %v348
    %505 = vmatpush.bf16.msra.mxu0 %v344
    %506 = vmatpush.bf16.msra.mxu0 %v340
    %507 = vmatmul.bf16.gmra.mxu0 %v39
    %v508 = vpop.f32.mrf.mxu0
    %v509 = vadd.f32 %v496, %v508
    %v510 = vpop.f32.mrf.mxu0
    %511 = vdwg.mxu0
    %512 = vmatpush.bf16.msra.mxu0 %v337
    %513 = vmatpush.bf16.msra.mxu0 %v333
    %514 = vmatpush.bf16.msra.mxu0 %v329
    %515 = vmatpush.bf16.msra.mxu0 %v325
    %516 = vmatpush.bf16.msra.mxu0 %v321
    %517 = vmatpush.bf16.msra.mxu0 %v317
    %518 = vmatpush.bf16.msra.mxu0 %v313
    %519 = vmatpush.bf16.msra.mxu0 %v309
    %520 = vmatmul.bf16.gmra.mxu0 %v38
    %v521 = vpop.f32.mrf.mxu0
    %v522 = vadd.f32 %v109, %v521
    %v523 = vpop.f32.mrf.mxu0
    %524 = vdwg.mxu0
    %525 = vmatpush.bf16.msra.mxu0 %v369
    %526 = vmatpush.bf16.msra.mxu0 %v365
    %527 = vmatpush.bf16.msra.mxu0 %v361
    %528 = vmatpush.bf16.msra.mxu0 %v357
    %529 = vmatpush.bf16.msra.mxu0 %v353
    %530 = vmatpush.bf16.msra.mxu0 %v349
    %531 = vmatpush.bf16.msra.mxu0 %v345
    %532 = vmatpush.bf16.msra.mxu0 %v341
    %533 = vmatmul.bf16.gmra.mxu0 %v39
    %v534 = vpop.f32.mrf.mxu0
    %v535 = vadd.f32 %v522, %v534
    %v536 = vpop.f32.mrf.mxu0
    %537 = vdwg.mxu0
    %v538 = vmax.f32 %v457, 0.0
    %v539 = vmax.f32 %v483, 0.0
    %v540 = vmax.f32 %v509, 0.0
    %v541 = vmax.f32 %v535, 0.0
    %v542 = vpack.c.bf16 %v538, %v538
    %v543 = vpack.c.bf16 %v539, %v539
    %v544 = vpack.c.bf16 %v540, %v540
    %v545 = vpack.c.bf16 %v541, %v541
    %v546 = vld [vmem:[%s3] sm:$0xf]
    %v547 = vld [vmem:[%s3 + $0x4] sm:$0xf]
    %v548 = vld [vmem:[%s3 + $0x8] sm:$0xf]
    %v549 = vld [vmem:[%s3 + $0xc] sm:$0xf]
    %v550 = vld [vmem:[%s3 + $0x10] sm:$0xf]
    %v551 = vld [vmem:[%s3 + $0x14] sm:$0xf]
    %v552 = vld [vmem:[%s3 + $0x18] sm:$0xf]
    %v553 = vld [vmem:[%s3 + $0x1c] sm:$0xf]
    %v554 = vld [vmem:[%s3 + $0x20] sm:$0xf]
    %v555 = vld [vmem:[%s3 + $0x24] sm:$0xf]
    %v556 = vld [vmem:[%s3 + $0x28] sm:$0xf]
    %v557 = vld [vmem:[%s3 + $0x2c] sm:$0xf]
    %v558 = vld [vmem:[%s3 + $0x30] sm:$0xf]
    %v559 = vld [vmem:[%s3 + $0x34] sm:$0xf]
    %v560 = vld [vmem:[%s3 + $0x38] sm:$0xf]
    %v561 = vld [vmem:[%s3 + $0x3c] sm:$0xf]
    %v562 = vld [vmem:[%s3 + $0x40] sm:$0xf]
    %v563 = vld [vmem:[%s3 + $0x44] sm:$0xf]
    %v564 = vld [vmem:[%s3 + $0x48] sm:$0xf]
    %v565 = vld [vmem:[%s3 + $0x4c] sm:$0xf]
    %v566 = vld [vmem:[%s3 + $0x50] sm:$0xf]
    %v567 = vld [vmem:[%s3 + $0x54] sm:$0xf]
    %v568 = vld [vmem:[%s3 + $0x58] sm:$0xf]
    %v569 = vld [vmem:[%s3 + $0x5c] sm:$0xf]
    %v570 = vld [vmem:[%s3 + $0x60] sm:$0xf]
    %v571 = vld [vmem:[%s3 + $0x64] sm:$0xf]
    %v572 = vld [vmem:[%s3 + $0x68] sm:$0xf]
    %v573 = vld [vmem:[%s3 + $0x6c] sm:$0xf]
    %v574 = vld [vmem:[%s3 + $0x70] sm:$0xf]
    %v575 = vld [vmem:[%s3 + $0x74] sm:$0xf]
    %v576 = vld [vmem:[%s3 + $0x78] sm:$0xf]
    %v577 = vld [vmem:[%s3 + $0x7c] sm:$0xf]
    %v578 = vld [vmem:[%s3 + $0x80] sm:$0xf]
    %v579 = vld [vmem:[%s3 + $0x84] sm:$0xf]
    %v580 = vld [vmem:[%s3 + $0x88] sm:$0xf]
    %v581 = vld [vmem:[%s3 + $0x8c] sm:$0xf]
    %v582 = vld [vmem:[%s3 + $0x90] sm:$0xf]
    %v583 = vld [vmem:[%s3 + $0x94] sm:$0xf]
    %v584 = vld [vmem:[%s3 + $0x98] sm:$0xf]
    %v585 = vld [vmem:[%s3 + $0x9c] sm:$0xf]
    %v586 = vld [vmem:[%s3 + $0xa0] sm:$0xf]
    %v587 = vld [vmem:[%s3 + $0xa4] sm:$0xf]
    %v588 = vld [vmem:[%s3 + $0xa8] sm:$0xf]
    %v589 = vld [vmem:[%s3 + $0xac] sm:$0xf]
    %v590 = vld [vmem:[%s3 + $0xb0] sm:$0xf]
    %v591 = vld [vmem:[%s3 + $0xb4] sm:$0xf]
    %v592 = vld [vmem:[%s3 + $0xb8] sm:$0xf]
    %v593 = vld [vmem:[%s3 + $0xbc] sm:$0xf]
    %v594 = vld [vmem:[%s3 + $0xc0] sm:$0xf]
    %v595 = vld [vmem:[%s3 + $0xc4] sm:$0xf]
    %v596 = vld [vmem:[%s3 + $0xc8] sm:$0xf]
    %v597 = vld [vmem:[%s3 + $0xcc] sm:$0xf]
    %v598 = vld [vmem:[%s3 + $0xd0] sm:$0xf]
    %v599 = vld [vmem:[%s3 + $0xd4] sm:$0xf]
    %v600 = vld [vmem:[%s3 + $0xd8] sm:$0xf]
    %v601 = vld [vmem:[%s3 + $0xdc] sm:$0xf]
    %v602 = vld [vmem:[%s3 + $0xe0] sm:$0xf]
    %v603 = vld [vmem:[%s3 + $0xe4] sm:$0xf]
    %v604 = vld [vmem:[%s3 + $0xe8] sm:$0xf]
    %v605 = vld [vmem:[%s3 + $0xec] sm:$0xf]
    %v606 = vld [vmem:[%s3 + $0xf0] sm:$0xf]
    %v607 = vld [vmem:[%s3 + $0xf4] sm:$0xf]
    %v608 = vld [vmem:[%s3 + $0xf8] sm:$0xf]
    %v609 = vld [vmem:[%s3 + $0xfc] sm:$0xf]
    %v610 = vld [vmem:[%s4] sm:$0x1]
    %v612 = vperm.slane %v610, 0
    %v678 = vunpack.c.l.b16 %v546
    %v679 = vunpack.c.l.b16 %v547
    %v680 = vunpack.c.l.b16 %v548
    %v681 = vunpack.c.l.b16 %v549
    %v682 = vunpack.c.l.b16 %v550
    %v683 = vunpack.c.l.b16 %v551
    %v684 = vunpack.c.l.b16 %v552
    %v685 = vunpack.c.l.b16 %v553
    %v686 = vunpack.c.l.b16 %v554
    %v687 = vunpack.c.l.b16 %v555
    %v688 = vunpack.c.l.b16 %v556
    %v689 = vunpack.c.l.b16 %v557
    %v690 = vunpack.c.l.b16 %v558
    %v691 = vunpack.c.l.b16 %v559
    %v692 = vunpack.c.l.b16 %v560
    %v693 = vunpack.c.l.b16 %v561
    %v694 = vunpack.c.l.b16 %v562
    %v695 = vunpack.c.l.b16 %v563
    %v696 = vunpack.c.l.b16 %v564
    %v697 = vunpack.c.l.b16 %v565
    %v698 = vunpack.c.l.b16 %v566
    %v699 = vunpack.c.l.b16 %v567
    %v700 = vunpack.c.l.b16 %v568
    %v701 = vunpack.c.l.b16 %v569
    %v702 = vunpack.c.l.b16 %v570
    %v703 = vunpack.c.l.b16 %v571
    %v704 = vunpack.c.l.b16 %v572
    %v705 = vunpack.c.l.b16 %v573
    %v706 = vunpack.c.l.b16 %v574
    %v707 = vunpack.c.l.b16 %v575
    %v708 = vunpack.c.l.b16 %v576
    %v709 = vunpack.c.l.b16 %v577
    %v710 = vunpack.c.l.b16 %v578
    %v711 = vunpack.c.l.b16 %v579
    %v712 = vunpack.c.l.b16 %v580
    %v713 = vunpack.c.l.b16 %v581
    %v714 = vunpack.c.l.b16 %v582
    %v715 = vunpack.c.l.b16 %v583
    %v716 = vunpack.c.l.b16 %v584
    %v717 = vunpack.c.l.b16 %v585
    %v718 = vunpack.c.l.b16 %v586
    %v719 = vunpack.c.l.b16 %v587
    %v720 = vunpack.c.l.b16 %v588
    %v721 = vunpack.c.l.b16 %v589
    %v722 = vunpack.c.l.b16 %v590
    %v723 = vunpack.c.l.b16 %v591
    %v724 = vunpack.c.l.b16 %v592
    %v725 = vunpack.c.l.b16 %v593
    %v726 = vunpack.c.l.b16 %v594
    %v727 = vunpack.c.l.b16 %v595
    %v728 = vunpack.c.l.b16 %v596
    %v729 = vunpack.c.l.b16 %v597
    %v730 = vunpack.c.l.b16 %v598
    %v731 = vunpack.c.l.b16 %v599
    %v732 = vunpack.c.l.b16 %v600
    %v733 = vunpack.c.l.b16 %v601
    %v734 = vunpack.c.l.b16 %v602
    %v735 = vunpack.c.l.b16 %v603
    %v736 = vunpack.c.l.b16 %v604
    %v737 = vunpack.c.l.b16 %v605
    %v738 = vunpack.c.l.b16 %v606
    %v739 = vunpack.c.l.b16 %v607
    %v740 = vunpack.c.l.b16 %v608
    %v741 = vunpack.c.l.b16 %v609
    %v742 = vpack.c.b16 %v679, %v678
    %v743 = vpack.c.b16 %v681, %v680
    %v744 = vpack.c.b16 %v683, %v682
    %v745 = vpack.c.b16 %v685, %v684
    %v746 = vpack.c.b16 %v687, %v686
    %v747 = vpack.c.b16 %v689, %v688
    %v748 = vpack.c.b16 %v691, %v690
    %v749 = vpack.c.b16 %v693, %v692
    %v750 = vpack.c.b16 %v695, %v694
    %v751 = vpack.c.b16 %v697, %v696
    %v752 = vpack.c.b16 %v699, %v698
    %v753 = vpack.c.b16 %v701, %v700
    %v754 = vpack.c.b16 %v703, %v702
    %v755 = vpack.c.b16 %v705, %v704
    %v756 = vpack.c.b16 %v707, %v706
    %v757 = vpack.c.b16 %v709, %v708
    %v758 = vpack.c.b16 %v711, %v710
    %v759 = vpack.c.b16 %v713, %v712
    %v760 = vpack.c.b16 %v715, %v714
    %v761 = vpack.c.b16 %v717, %v716
    %v762 = vpack.c.b16 %v719, %v718
    %v763 = vpack.c.b16 %v721, %v720
    %v764 = vpack.c.b16 %v723, %v722
    %v765 = vpack.c.b16 %v725, %v724
    %v766 = vpack.c.b16 %v727, %v726
    %v767 = vpack.c.b16 %v729, %v728
    %v768 = vpack.c.b16 %v731, %v730
    %v769 = vpack.c.b16 %v733, %v732
    %v770 = vpack.c.b16 %v735, %v734
    %v771 = vpack.c.b16 %v737, %v736
    %v772 = vpack.c.b16 %v739, %v738
    %v773 = vpack.c.b16 %v741, %v740
    %806 = vmatpush.bf16.msra.mxu0 %v749
    %807 = vmatpush.bf16.msra.mxu0 %v748
    %808 = vmatpush.bf16.msra.mxu0 %v747
    %809 = vmatpush.bf16.msra.mxu0 %v746
    %810 = vmatpush.bf16.msra.mxu0 %v745
    %811 = vmatpush.bf16.msra.mxu0 %v744
    %812 = vmatpush.bf16.msra.mxu0 %v743
    %813 = vmatpush.bf16.msra.mxu0 %v742
    %814 = vmatmul.bf16.gmra.mxu0 %v542
    %v815 = vpop.f32.mrf.mxu0
    %v816 = vadd.f32 %v612, %v815
    %v817 = vpop.f32.mrf.mxu0
    %818 = vdwg.mxu0
    %819 = vmatpush.bf16.msra.mxu0 %v757
    %820 = vmatpush.bf16.msra.mxu0 %v756
    %821 = vmatpush.bf16.msra.mxu0 %v755
    %822 = vmatpush.bf16.msra.mxu0 %v754
    %823 = vmatpush.bf16.msra.mxu0 %v753
    %824 = vmatpush.bf16.msra.mxu0 %v752
    %825 = vmatpush.bf16.msra.mxu0 %v751
    %826 = vmatpush.bf16.msra.mxu0 %v750
    %827 = vmatmul.bf16.gmra.mxu0 %v543
    %v828 = vpop.f32.mrf.mxu0
    %v829 = vadd.f32 %v816, %v828
    %v830 = vpop.f32.mrf.mxu0
    %831 = vdwg.mxu0
    %832 = vmatpush.bf16.msra.mxu0 %v765
    %833 = vmatpush.bf16.msra.mxu0 %v764
    %834 = vmatpush.bf16.msra.mxu0 %v763
    %835 = vmatpush.bf16.msra.mxu0 %v762
    %836 = vmatpush.bf16.msra.mxu0 %v761
    %837 = vmatpush.bf16.msra.mxu0 %v760
    %838 = vmatpush.bf16.msra.mxu0 %v759
    %839 = vmatpush.bf16.msra.mxu0 %v758
    %840 = vmatmul.bf16.gmra.mxu0 %v544
    %v841 = vpop.f32.mrf.mxu0
    %v842 = vadd.f32 %v829, %v841
    %v843 = vpop.f32.mrf.mxu0
    %844 = vdwg.mxu0
    %845 = vmatpush.bf16.msra.mxu0 %v773
    %846 = vmatpush.bf16.msra.mxu0 %v772
    %847 = vmatpush.bf16.msra.mxu0 %v771
    %848 = vmatpush.bf16.msra.mxu0 %v770
    %849 = vmatpush.bf16.msra.mxu0 %v769
    %850 = vmatpush.bf16.msra.mxu0 %v768
    %851 = vmatpush.bf16.msra.mxu0 %v767
    %852 = vmatpush.bf16.msra.mxu0 %v766
    %853 = vmatmul.bf16.gmra.mxu0 %v545
    %v854 = vpop.f32.mrf.mxu0
    %v855 = vadd.f32 %v842, %v854
    %v856 = vpop.f32.mrf.mxu0
    %857 = vdwg.mxu0
    %858 = vst [vmem:[%s5] sm:$0xff] %v855
    // Predicated region
    $region26: #{_run_mlp.1} parent=1 // pred_check
      _
    $region27: #{_run_mlp.1} parent=1 // pred_check_branch
      %860 = sbr.rel (0) target = $region29
    $region28: #{_run_mlp.1} parent=1 // pred_region
      _
    $region29: #{_run_mlp.1} parent=1 // pred_fallthru
      _
    // Predicated region
    $region30: #{_run_mlp.1} parent=1 // pred_check
      _
    $region31: #{_run_mlp.1} parent=1 // pred_check_branch
      %862 = sbr.rel (0) target = $region33
    $region32: #{_run_mlp.1} parent=1 // pred_region
      _
    $region33: #{_run_mlp.1} parent=1 // pred_fallthru
      _
    %863 = vsyncpa [#allocation3], 1

// kernel: _run_mlp.1
$region0: #{_run_mlp.1}
  #allocation0 [shape = 'u32[]', space=smem, size = 0x4, offset = 0x4, fixed_abs, tag = 'smem constant byte address 0x4 - core index']
  #allocation1 [shape = 'u32[72,128]{1,0:T(1,128)}', space=vmem, size = 0x9000, scoped, tag = 'internal scratch']
  %s0 = inlined_call_operand.vmem [shape: f32[8,256], index: 0, kind: input, shape index: {}]
  %s1 = inlined_call_operand.hbm [shape: bf16[256,512], index: 1, kind: input, shape index: {}]
  %s2 = inlined_call_operand.vmem [shape: f32[1,512], index: 2, kind: input, shape index: {}]
  %s3 = inlined_call_operand.vmem [shape: bf16[512,128], index: 3, kind: input, shape index: {}]
  %s4 = inlined_call_operand.vmem [shape: f32[1,128], index: 4, kind: input, shape index: {}]
  %s5 = inlined_call_operand.vmem [shape: f32[8,128], index: 5, kind: output, shape index: {}]
  %s6 = sld [smem:[#allocation0]]
  $region34: #{_run_mlp.1} parent=0
    _
  %s8 = ssub.s32 1, %s6
  %s9 = scalar_select 0, %s8, %s6
  $region1: #{_run_mlp.1} parent=0
    #allocation2 [shape = 'u8[262144]{0}', space=vmem, size = 0x40000, scoped, tag = 'input window, operand 1, single buffered']
    #allocation3 [shape = 's32[1]{0}', space=sflag, size = 0x4, scoped, tag = 'scoped memory for _run_mlp.1']
    %10 = vsyncpa [#allocation3], 0
    // Predicated region
    $region2: #{_run_mlp.1} parent=1 // pred_check
      _
    $region3: #{_run_mlp.1} parent=1 // pred_check_branch
      %12 = sbr.rel (0) target = $region5
    $region4: #{_run_mlp.1} parent=1 // pred_region
      _
    $region5: #{_run_mlp.1} parent=1 // pred_fallthru
      _
    // Predicated region
    $region6: #{_run_mlp.1} parent=1 // pred_check
      _
    $region7: #{_run_mlp.1} parent=1 // pred_check_branch
      %14 = sbr.rel (0) target = $region9
    $region8: #{_run_mlp.1} parent=1 // pred_region
      %16 = vsyncadd [#allocation3], 0
      %s17 = sshll.u32 %s1, 4
      %s18 = int_to_ptr.hbm [resolvable:$true] %s17
      %s19 = sshll.u32 [#allocation2], 4
      %s20 = int_to_ptr.vmem [resolvable:$true] %s19
      %25 = dma.hbm_to_vmem [thread:$0]  %s18, 8192, %s20, [#allocation3], 256, 256, 16
    $region9: #{_run_mlp.1} parent=1 // pred_fallthru
      _
    // Predicated region
    $region10: #{_run_mlp.1} parent=1 // pred_check
      _
    $region11: #{_run_mlp.1} parent=1 // pred_check_branch
      %27 = sbr.rel (0) target = $region13
    $region12: #{_run_mlp.1} parent=1 // pred_region
      _
    $region13: #{_run_mlp.1} parent=1 // pred_fallthru
      _
    // Predicated region
    $region14: #{_run_mlp.1} parent=1 // pred_check
      _
    $region15: #{_run_mlp.1} parent=1 // pred_check_branch
      %29 = sbr.rel (0) target = $region17
    $region16: #{_run_mlp.1} parent=1 // pred_region
      _
    $region17: #{_run_mlp.1} parent=1 // pred_fallthru
      _
    // Predicated region
    $region18: #{_run_mlp.1} parent=1 // pred_check
      _
    $region19: #{_run_mlp.1} parent=1 // pred_check_branch
      %31 = sbr.rel (0) target = $region21
    $region20: #{_run_mlp.1} parent=1 // pred_region
      _
    $region21: #{_run_mlp.1} parent=1 // pred_fallthru
      _
    // Predicated region
    $region22: #{_run_mlp.1} parent=1 // pred_check
      _
    $region23: #{_run_mlp.1} parent=1 // pred_check_branch
      %33 = sbr.rel (0) target = $region25
    $region24: #{_run_mlp.1} parent=1 // pred_region
      %35 = dma.done [#allocation3], 8192
    $region25: #{_run_mlp.1} parent=1 // pred_fallthru
      _
    %v36 = vld [vmem:[%s0] sm:$0xff]
    %v37 = vld [vmem:[%s0 + $0x8] sm:$0xff]
    %v38 = vpack.c.bf16 %v36, %v36
    %v39 = vpack.c.bf16 %v37, %v37
    %v40 = vld [vmem:[#allocation2] sm:$0xff]
    %v41 = vld [vmem:[#allocation2 + $0x8] sm:$0xff]
    %v42 = vld [vmem:[#allocation2 + $0x10] sm:$0xff]
    %v43 = vld [vmem:[#allocation2 + $0x18] sm:$0xff]
    %v44 = vld [vmem:[#allocation2 + $0x20] sm:$0xff]
    %v45 = vld [vmem:[#allocation2 + $0x28] sm:$0xff]
    %v46 = vld [vmem:[#allocation2 + $0x30] sm:$0xff]
    %v47 = vld [vmem:[#allocation2 + $0x38] sm:$0xff]
    %v48 = vld [vmem:[#allocation2 + $0x40] sm:$0xff]
    %v49 = vld [vmem:[#allocation2 + $0x48] sm:$0xff]
    %v50 = vld [vmem:[#allocation2 + $0x50] sm:$0xff]
    %v51 = vld [vmem:[#allocation2 + $0x58] sm:$0xff]
    %v52 = vld [vmem:[#allocation2 + $0x60] sm:$0xff]
    %v53 = vld [vmem:[#allocation2 + $0x68] sm:$0xff]
    %v54 = vld [vmem:[#allocation2 + $0x70] sm:$0xff]
    %v55 = vld [vmem:[#allocation2 + $0x78] sm:$0xff]
    %v56 = vld [vmem:[#allocation2 + $0x80] sm:$0xff]
    %v57 = vld [vmem:[#allocation2 + $0x88] sm:$0xff]
    %v58 = vld [vmem:[#allocation2 + $0x90] sm:$0xff]
    %v59 = vld [vmem:[#allocation2 + $0x98] sm:$0xff]
    %v60 = vld [vmem:[#allocation2 + $0xa0] sm:$0xff]
    %v61 = vld [vmem:[#allocation2 + $0xa8] sm:$0xff]
    %v62 = vld [vmem:[#allocation2 + $0xb0] sm:$0xff]
    %v63 = vld [vmem:[#allocation2 + $0xb8] sm:$0xff]
    %v64 = vld [vmem:[#allocation2 + $0xc0] sm:$0xff]
    %v65 = vld [vmem:[#allocation2 + $0xc8] sm:$0xff]
    %v66 = vld [vmem:[#allocation2 + $0xd0] sm:$0xff]
    %v67 = vld [vmem:[#allocation2 + $0xd8] sm:$0xff]
    %v68 = vld [vmem:[#allocation2 + $0xe0] sm:$0xff]
    %v69 = vld [vmem:[#allocation2 + $0xe8] sm:$0xff]
    %v70 = vld [vmem:[#allocation2 + $0xf0] sm:$0xff]
    %v71 = vld [vmem:[#allocation2 + $0xf8] sm:$0xff]
    %v72 = vld [vmem:[#allocation2 + $0x100] sm:$0xff]
    %v73 = vld [vmem:[#allocation2 + $0x108] sm:$0xff]
    %v74 = vld [vmem:[#allocation2 + $0x110] sm:$0xff]
    %v75 = vld [vmem:[#allocation2 + $0x118] sm:$0xff]
    %v76 = vld [vmem:[#allocation2 + $0x120] sm:$0xff]
    %v77 = vld [vmem:[#allocation2 + $0x128] sm:$0xff]
    %v78 = vld [vmem:[#allocation2 + $0x130] sm:$0xff]
    %v79 = vld [vmem:[#allocation2 + $0x138] sm:$0xff]
    %v80 = vld [vmem:[#allocation2 + $0x140] sm:$0xff]
    %v81 = vld [vmem:[#allocation2 + $0x148] sm:$0xff]
    %v82 = vld [vmem:[#allocation2 + $0x150] sm:$0xff]
    %v83 = vld [vmem:[#allocation2 + $0x158] sm:$0xff]
    %v84 = vld [vmem:[#allocation2 + $0x160] sm:$0xff]
    %v85 = vld [vmem:[#allocation2 + $0x168] sm:$0xff]
    %v86 = vld [vmem:[#allocation2 + $0x170] sm:$0xff]
    %v87 = vld [vmem:[#allocation2 + $0x178] sm:$0xff]
    %v88 = vld [vmem:[#allocation2 + $0x180] sm:$0xff]
    %v89 = vld [vmem:[#allocation2 + $0x188] sm:$0xff]
    %v90 = vld [vmem:[#allocation2 + $0x190] sm:$0xff]
    %v91 = vld [vmem:[#allocation2 + $0x198] sm:$0xff]
    %v92 = vld [vmem:[#allocation2 + $0x1a0] sm:$0xff]
    %v93 = vld [vmem:[#allocation2 + $0x1a8] sm:$0xff]
    %v94 = vld [vmem:[#allocation2 + $0x1b0] sm:$0xff]
    %v95 = vld [vmem:[#allocation2 + $0x1b8] sm:$0xff]
    %v96 = vld [vmem:[#allocation2 + $0x1c0] sm:$0xff]
    %v97 = vld [vmem:[#allocation2 + $0x1c8] sm:$0xff]
    %v98 = vld [vmem:[#allocation2 + $0x1d0] sm:$0xff]
    %v99 = vld [vmem:[#allocation2 + $0x1d8] sm:$0xff]
    %v100 = vld [vmem:[#allocation2 + $0x1e0] sm:$0xff]
    %v101 = vld [vmem:[#allocation2 + $0x1e8] sm:$0xff]
    %v102 = vld [vmem:[#allocation2 + $0x1f0] sm:$0xff]
    %v103 = vld [vmem:[#allocation2 + $0x1f8] sm:$0xff]
    %v104 = vld [vmem:[%s2] sm:$0xf]
    %v106 = vperm.slane %v104, 0
    %v107 = vperm.slane %v104, 1
    %v108 = vperm.slane %v104, 2
    %v109 = vperm.slane %v104, 3
    %v178 = vunpack.c.l.b16 %v40
    %v179 = vunpack.c.h.b16 %v40
    %v180 = vunpack.c.l.b16 %v41
    %v181 = vunpack.c.h.b16 %v41
    %v182 = vunpack.c.l.b16 %v42
    %v183 = vunpack.c.h.b16 %v42
    %v184 = vunpack.c.l.b16 %v43
    %v185 = vunpack.c.h.b16 %v43
    %v186 = vunpack.c.l.b16 %v44
    %v187 = vunpack.c.h.b16 %v44
    %v188 = vunpack.c.l.b16 %v45
    %v189 = vunpack.c.h.b16 %v45
    %v190 = vunpack.c.l.b16 %v46
    %v191 = vunpack.c.h.b16 %v46
    %v192 = vunpack.c.l.b16 %v47
    %v193 = vunpack.c.h.b16 %v47
    %v194 = vunpack.c.l.b16 %v48
    %v195 = vunpack.c.h.b16 %v48
    %v196 = vunpack.c.l.b16 %v49
    %v197 = vunpack.c.h.b16 %v49
    %v198 = vunpack.c.l.b16 %v50
    %v199 = vunpack.c.h.b16 %v50
    %v200 = vunpack.c.l.b16 %v51
    %v201 = vunpack.c.h.b16 %v51
    %v202 = vunpack.c.l.b16 %v52
    %v203 = vunpack.c.h.b16 %v52
    %v204 = vunpack.c.l.b16 %v53
    %v205 = vunpack.c.h.b16 %v53
    %v206 = vunpack.c.l.b16 %v54
    %v207 = vunpack.c.h.b16 %v54
    %v208 = vunpack.c.l.b16 %v55
    %v209 = vunpack.c.h.b16 %v55
    %v210 = vunpack.c.l.b16 %v56
    %v211 = vunpack.c.h.b16 %v56
    %v212 = vunpack.c.l.b16 %v57
    %v213 = vunpack.c.h.b16 %v57
    %v214 = vunpack.c.l.b16 %v58
    %v215 = vunpack.c.h.b16 %v58
    %v216 = vunpack.c.l.b16 %v59
    %v217 = vunpack.c.h.b16 %v59
    %v218 = vunpack.c.l.b16 %v60
    %v219 = vunpack.c.h.b16 %v60
    %v220 = vunpack.c.l.b16 %v61
    %v221 = vunpack.c.h.b16 %v61
    %v222 = vunpack.c.l.b16 %v62
    %v223 = vunpack.c.h.b16 %v62
    %v224 = vunpack.c.l.b16 %v63
    %v225 = vunpack.c.h.b16 %v63
    %v226 = vunpack.c.l.b16 %v64
    %v227 = vunpack.c.h.b16 %v64
    %v228 = vunpack.c.l.b16 %v65
    %v229 = vunpack.c.h.b16 %v65
    %v230 = vunpack.c.l.b16 %v66
    %v231 = vunpack.c.h.b16 %v66
    %v232 = vunpack.c.l.b16 %v67
    %v233 = vunpack.c.h.b16 %v67
    %v234 = vunpack.c.l.b16 %v68
    %v235 = vunpack.c.h.b16 %v68
    %v236 = vunpack.c.l.b16 %v69
    %v237 = vunpack.c.h.b16 %v69
    %v238 = vunpack.c.l.b16 %v70
    %v239 = vunpack.c.h.b16 %v70
    %v240 = vunpack.c.l.b16 %v71
    %v241 = vunpack.c.h.b16 %v71
    %v242 = vunpack.c.l.b16 %v72
    %v243 = vunpack.c.h.b16 %v72
    %v244 = vunpack.c.l.b16 %v73
    %v245 = vunpack.c.h.b16 %v73
    %v246 = vunpack.c.l.b16 %v74
    %v247 = vunpack.c.h.b16 %v74
    %v248 = vunpack.c.l.b16 %v75
    %v249 = vunpack.c.h.b16 %v75
    %v250 = vunpack.c.l.b16 %v76
    %v251 = vunpack.c.h.b16 %v76
    %v252 = vunpack.c.l.b16 %v77
    %v253 = vunpack.c.h.b16 %v77
    %v254 = vunpack.c.l.b16 %v78
    %v255 = vunpack.c.h.b16 %v78
    %v256 = vunpack.c.l.b16 %v79
    %v257 = vunpack.c.h.b16 %v79
    %v258 = vunpack.c.l.b16 %v80
    %v259 = vunpack.c.h.b16 %v80
    %v260 = vunpack.c.l.b16 %v81
    %v261 = vunpack.c.h.b16 %v81
    %v262 = vunpack.c.l.b16 %v82
    %v263 = vunpack.c.h.b16 %v82
    %v264 = vunpack.c.l.b16 %v83
    %v265 = vunpack.c.h.b16 %v83
    %v266 = vunpack.c.l.b16 %v84
    %v267 = vunpack.c.h.b16 %v84
    %v268 = vunpack.c.l.b16 %v85
    %v269 = vunpack.c.h.b16 %v85
    %v270 = vunpack.c.l.b16 %v86
    %v271 = vunpack.c.h.b16 %v86
    %v272 = vunpack.c.l.b16 %v87
    %v273 = vunpack.c.h.b16 %v87
    %v274 = vunpack.c.l.b16 %v88
    %v275 = vunpack.c.h.b16 %v88
    %v276 = vunpack.c.l.b16 %v89
    %v277 = vunpack.c.h.b16 %v89
    %v278 = vunpack.c.l.b16 %v90
    %v279 = vunpack.c.h.b16 %v90
    %v280 = vunpack.c.l.b16 %v91
    %v281 = vunpack.c.h.b16 %v91
    %v282 = vunpack.c.l.b16 %v92
    %v283 = vunpack.c.h.b16 %v92
    %v284 = vunpack.c.l.b16 %v93
    %v285 = vunpack.c.h.b16 %v93
    %v286 = vunpack.c.l.b16 %v94
    %v287 = vunpack.c.h.b16 %v94
    %v288 = vunpack.c.l.b16 %v95
    %v289 = vunpack.c.h.b16 %v95
    %v290 = vunpack.c.l.b16 %v96
    %v291 = vunpack.c.h.b16 %v96
    %v292 = vunpack.c.l.b16 %v97
    %v293 = vunpack.c.h.b16 %v97
    %v294 = vunpack.c.l.b16 %v98
    %v295 = vunpack.c.h.b16 %v98
    %v296 = vunpack.c.l.b16 %v99
    %v297 = vunpack.c.h.b16 %v99
    %v298 = vunpack.c.l.b16 %v100
    %v299 = vunpack.c.h.b16 %v100
    %v300 = vunpack.c.l.b16 %v101
    %v301 = vunpack.c.h.b16 %v101
    %v302 = vunpack.c.l.b16 %v102
    %v303 = vunpack.c.h.b16 %v102
    %v304 = vunpack.c.l.b16 %v103
    %v305 = vunpack.c.h.b16 %v103
    %v306 = vpack.c.b16 %v182, %v178
    %v307 = vpack.c.b16 %v183, %v179
    %v308 = vpack.c.b16 %v184, %v180
    %v309 = vpack.c.b16 %v185, %v181
    %v310 = vpack.c.b16 %v190, %v186
    %v311 = vpack.c.b16 %v191, %v187
    %v312 = vpack.c.b16 %v192, %v188
    %v313 = vpack.c.b16 %v193, %v189
    %v314 = vpack.c.b16 %v198, %v194
    %v315 = vpack.c.b16 %v199, %v195
    %v316 = vpack.c.b16 %v200, %v196
    %v317 = vpack.c.b16 %v201, %v197
    %v318 = vpack.c.b16 %v206, %v202
    %v319 = vpack.c.b16 %v207, %v203
    %v320 = vpack.c.b16 %v208, %v204
    %v321 = vpack.c.b16 %v209, %v205
    %v322 = vpack.c.b16 %v214, %v210
    %v323 = vpack.c.b16 %v215, %v211
    %v324 = vpack.c.b16 %v216, %v212
    %v325 = vpack.c.b16 %v217, %v213
    %v326 = vpack.c.b16 %v222, %v218
    %v327 = vpack.c.b16 %v223, %v219
    %v328 = vpack.c.b16 %v224, %v220
    %v329 = vpack.c.b16 %v225, %v221
    %v330 = vpack.c.b16 %v230, %v226
    %v331 = vpack.c.b16 %v231, %v227
    %v332 = vpack.c.b16 %v232, %v228
    %v333 = vpack.c.b16 %v233, %v229
    %v334 = vpack.c.b16 %v238, %v234
    %v335 = vpack.c.b16 %v239, %v235
    %v336 = vpack.c.b16 %v240, %v236
    %v337 = vpack.c.b16 %v241, %v237
    %v338 = vpack.c.b16 %v246, %v242
    %v339 = vpack.c.b16 %v247, %v243
    %v340 = vpack.c.b16 %v248, %v244
    %v341 = vpack.c.b16 %v249, %v245
    %v342 = vpack.c.b16 %v254, %v250
    %v343 = vpack.c.b16 %v255, %v251
    %v344 = vpack.c.b16 %v256, %v252
    %v345 = vpack.c.b16 %v257, %v253
    %v346 = vpack.c.b16 %v262, %v258
    %v347 = vpack.c.b16 %v263, %v259
    %v348 = vpack.c.b16 %v264, %v260
    %v349 = vpack.c.b16 %v265, %v261
    %v350 = vpack.c.b16 %v270, %v266
    %v351 = vpack.c.b16 %v271, %v267
    %v352 = vpack.c.b16 %v272, %v268
    %v353 = vpack.c.b16 %v273, %v269
    %v354 = vpack.c.b16 %v278, %v274
    %v355 = vpack.c.b16 %v279, %v275
    %v356 = vpack.c.b16 %v280, %v276
    %v357 = vpack.c.b16 %v281, %v277
    %v358 = vpack.c.b16 %v286, %v282
    %v359 = vpack.c.b16 %v287, %v283
    %v360 = vpack.c.b16 %v288, %v284
    %v361 = vpack.c.b16 %v289, %v285
    %v362 = vpack.c.b16 %v294, %v290
    %v363 = vpack.c.b16 %v295, %v291
    %v364 = vpack.c.b16 %v296, %v292
    %v365 = vpack.c.b16 %v297, %v293
    %v366 = vpack.c.b16 %v302, %v298
    %v367 = vpack.c.b16 %v303, %v299
    %v368 = vpack.c.b16 %v304, %v300
    %v369 = vpack.c.b16 %v305, %v301
    %434 = vmatpush.bf16.msra.mxu0 %v334
    %435 = vmatpush.bf16.msra.mxu0 %v330
    %436 = vmatpush.bf16.msra.mxu0 %v326
    %437 = vmatpush.bf16.msra.mxu0 %v322
    %438 = vmatpush.bf16.msra.mxu0 %v318
    %439 = vmatpush.bf16.msra.mxu0 %v314
    %440 = vmatpush.bf16.msra.mxu0 %v310
    %441 = vmatpush.bf16.msra.mxu0 %v306
    %442 = vmatmul.bf16.gmra.mxu0 %v38
    %v443 = vpop.f32.mrf.mxu0
    %v444 = vadd.f32 %v106, %v443
    %v445 = vpop.f32.mrf.mxu0
    %446 = vdwg.mxu0
    %447 = vmatpush.bf16.msra.mxu0 %v366
    %448 = vmatpush.bf16.msra.mxu0 %v362
    %449 = vmatpush.bf16.msra.mxu0 %v358
    %450 = vmatpush.bf16.msra.mxu0 %v354
    %451 = vmatpush.bf16.msra.mxu0 %v350
    %452 = vmatpush.bf16.msra.mxu0 %v346
    %453 = vmatpush.bf16.msra.mxu0 %v342
    %454 = vmatpush.bf16.msra.mxu0 %v338
    %455 = vmatmul.bf16.gmra.mxu0 %v39
    %v456 = vpop.f32.mrf.mxu0
    %v457 = vadd.f32 %v444, %v456
    %v458 = vpop.f32.mrf.mxu0
    %459 = vdwg.mxu0
    %460 = vmatpush.bf16.msra.mxu0 %v335
    %461 = vmatpush.bf16.msra.mxu0 %v331
    %462 = vmatpush.bf16.msra.mxu0 %v327
    %463 = vmatpush.bf16.msra.mxu0 %v323
    %464 = vmatpush.bf16.msra.mxu0 %v319
    %465 = vmatpush.bf16.msra.mxu0 %v315
    %466 = vmatpush.bf16.msra.mxu0 %v311
    %467 = vmatpush.bf16.msra.mxu0 %v307
    %468 = vmatmul.bf16.gmra.mxu0 %v38
    %v469 = vpop.f32.mrf.mxu0
    %v470 = vadd.f32 %v107, %v469
    %v471 = vpop.f32.mrf.mxu0
    %472 = vdwg.mxu0
    %473 = vmatpush.bf16.msra.mxu0 %v367
    %474 = vmatpush.bf16.msra.mxu0 %v363
    %475 = vmatpush.bf16.msra.mxu0 %v359
    %476 = vmatpush.bf16.msra.mxu0 %v355
    %477 = vmatpush.bf16.msra.mxu0 %v351
    %478 = vmatpush.bf16.msra.mxu0 %v347
    %479 = vmatpush.bf16.msra.mxu0 %v343
    %480 = vmatpush.bf16.msra.mxu0 %v339
    %481 = vmatmul.bf16.gmra.mxu0 %v39
    %v482 = vpop.f32.mrf.mxu0
    %v483 = vadd.f32 %v470, %v482
    %v484 = vpop.f32.mrf.mxu0
    %485 = vdwg.mxu0
    %486 = vmatpush.bf16.msra.mxu0 %v336
    %487 = vmatpush.bf16.msra.mxu0 %v332
    %488 = vmatpush.bf16.msra.mxu0 %v328
    %489 = vmatpush.bf16.msra.mxu0 %v324
    %490 = vmatpush.bf16.msra.mxu0 %v320
    %491 = vmatpush.bf16.msra.mxu0 %v316
    %492 = vmatpush.bf16.msra.mxu0 %v312
    %493 = vmatpush.bf16.msra.mxu0 %v308
    %494 = vmatmul.bf16.gmra.mxu0 %v38
    %v495 = vpop.f32.mrf.mxu0
    %v496 = vadd.f32 %v108, %v495
    %v497 = vpop.f32.mrf.mxu0
    %498 = vdwg.mxu0
    %499 = vmatpush.bf16.msra.mxu0 %v368
    %500 = vmatpush.bf16.msra.mxu0 %v364
    %501 = vmatpush.bf16.msra.mxu0 %v360
    %502 = vmatpush.bf16.msra.mxu0 %v356
    %503 = vmatpush.bf16.msra.mxu0 %v352
    %504 = vmatpush.bf16.msra.mxu0 %v348
    %505 = vmatpush.bf16.msra.mxu0 %v344
    %506 = vmatpush.bf16.msra.mxu0 %v340
    %507 = vmatmul.bf16.gmra.mxu0 %v39
    %v508 = vpop.f32.mrf.mxu0
    %v509 = vadd.f32 %v496, %v508
    %v510 = vpop.f32.mrf.mxu0
    %511 = vdwg.mxu0
    %512 = vmatpush.bf16.msra.mxu0 %v337
    %513 = vmatpush.bf16.msra.mxu0 %v333
    %514 = vmatpush.bf16.msra.mxu0 %v329
    %515 = vmatpush.bf16.msra.mxu0 %v325
    %516 = vmatpush.bf16.msra.mxu0 %v321
    %517 = vmatpush.bf16.msra.mxu0 %v317
    %518 = vmatpush.bf16.msra.mxu0 %v313
    %519 = vmatpush.bf16.msra.mxu0 %v309
    %520 = vmatmul.bf16.gmra.mxu0 %v38
    %v521 = vpop.f32.mrf.mxu0
    %v522 = vadd.f32 %v109, %v521
    %v523 = vpop.f32.mrf.mxu0
    %524 = vdwg.mxu0
    %525 = vmatpush.bf16.msra.mxu0 %v369
    %526 = vmatpush.bf16.msra.mxu0 %v365
    %527 = vmatpush.bf16.msra.mxu0 %v361
    %528 = vmatpush.bf16.msra.mxu0 %v357
    %529 = vmatpush.bf16.msra.mxu0 %v353
    %530 = vmatpush.bf16.msra.mxu0 %v349
    %531 = vmatpush.bf16.msra.mxu0 %v345
    %532 = vmatpush.bf16.msra.mxu0 %v341
    %533 = vmatmul.bf16.gmra.mxu0 %v39
    %v534 = vpop.f32.mrf.mxu0
    %v535 = vadd.f32 %v522, %v534
    %v536 = vpop.f32.mrf.mxu0
    %537 = vdwg.mxu0
    %v538 = vmax.f32 %v457, 0.0
    %v539 = vmax.f32 %v483, 0.0
    %v540 = vmax.f32 %v509, 0.0
    %v541 = vmax.f32 %v535, 0.0
    %v542 = vpack.c.bf16 %v538, %v538
    %v543 = vpack.c.bf16 %v539, %v539
    %v544 = vpack.c.bf16 %v540, %v540
    %v545 = vpack.c.bf16 %v541, %v541
    %v546 = vld [vmem:[%s3] sm:$0xf]
    %v547 = vld [vmem:[%s3 + $0x4] sm:$0xf]
    %v548 = vld [vmem:[%s3 + $0x8] sm:$0xf]
    %v549 = vld [vmem:[%s3 + $0xc] sm:$0xf]
    %v550 = vld [vmem:[%s3 + $0x10] sm:$0xf]
    %v551 = vld [vmem:[%s3 + $0x14] sm:$0xf]
    %v552 = vld [vmem:[%s3 + $0x18] sm:$0xf]
    %v553 = vld [vmem:[%s3 + $0x1c] sm:$0xf]
    %v554 = vld [vmem:[%s3 + $0x20] sm:$0xf]
    %v555 = vld [vmem:[%s3 + $0x24] sm:$0xf]
    %v556 = vld [vmem:[%s3 + $0x28] sm:$0xf]
    %v557 = vld [vmem:[%s3 + $0x2c] sm:$0xf]
    %v558 = vld [vmem:[%s3 + $0x30] sm:$0xf]
    %v559 = vld [vmem:[%s3 + $0x34] sm:$0xf]
    %v560 = vld [vmem:[%s3 + $0x38] sm:$0xf]
    %v561 = vld [vmem:[%s3 + $0x3c] sm:$0xf]
    %v562 = vld [vmem:[%s3 + $0x40] sm:$0xf]
    %v563 = vld [vmem:[%s3 + $0x44] sm:$0xf]
    %v564 = vld [vmem:[%s3 + $0x48] sm:$0xf]
    %v565 = vld [vmem:[%s3 + $0x4c] sm:$0xf]
    %v566 = vld [vmem:[%s3 + $0x50] sm:$0xf]
    %v567 = vld [vmem:[%s3 + $0x54] sm:$0xf]
    %v568 = vld [vmem:[%s3 + $0x58] sm:$0xf]
    %v569 = vld [vmem:[%s3 + $0x5c] sm:$0xf]
    %v570 = vld [vmem:[%s3 + $0x60] sm:$0xf]
    %v571 = vld [vmem:[%s3 + $0x64] sm:$0xf]
    %v572 = vld [vmem:[%s3 + $0x68] sm:$0xf]
    %v573 = vld [vmem:[%s3 + $0x6c] sm:$0xf]
    %v574 = vld [vmem:[%s3 + $0x70] sm:$0xf]
    %v575 = vld [vmem:[%s3 + $0x74] sm:$0xf]
    %v576 = vld [vmem:[%s3 + $0x78] sm:$0xf]
    %v577 = vld [vmem:[%s3 + $0x7c] sm:$0xf]
    %v578 = vld [vmem:[%s3 + $0x80] sm:$0xf]
    %v579 = vld [vmem:[%s3 + $0x84] sm:$0xf]
    %v580 = vld [vmem:[%s3 + $0x88] sm:$0xf]
    %v581 = vld [vmem:[%s3 + $0x8c] sm:$0xf]
    %v582 = vld [vmem:[%s3 + $0x90] sm:$0xf]
    %v583 = vld [vmem:[%s3 + $0x94] sm:$0xf]
    %v584 = vld [vmem:[%s3 + $0x98] sm:$0xf]
    %v585 = vld [vmem:[%s3 + $0x9c] sm:$0xf]
    %v586 = vld [vmem:[%s3 + $0xa0] sm:$0xf]
    %v587 = vld [vmem:[%s3 + $0xa4] sm:$0xf]
    %v588 = vld [vmem:[%s3 + $0xa8] sm:$0xf]
    %v589 = vld [vmem:[%s3 + $0xac] sm:$0xf]
    %v590 = vld [vmem:[%s3 + $0xb0] sm:$0xf]
    %v591 = vld [vmem:[%s3 + $0xb4] sm:$0xf]
    %v592 = vld [vmem:[%s3 + $0xb8] sm:$0xf]
    %v593 = vld [vmem:[%s3 + $0xbc] sm:$0xf]
    %v594 = vld [vmem:[%s3 + $0xc0] sm:$0xf]
    %v595 = vld [vmem:[%s3 + $0xc4] sm:$0xf]
    %v596 = vld [vmem:[%s3 + $0xc8] sm:$0xf]
    %v597 = vld [vmem:[%s3 + $0xcc] sm:$0xf]
    %v598 = vld [vmem:[%s3 + $0xd0] sm:$0xf]
    %v599 = vld [vmem:[%s3 + $0xd4] sm:$0xf]
    %v600 = vld [vmem:[%s3 + $0xd8] sm:$0xf]
    %v601 = vld [vmem:[%s3 + $0xdc] sm:$0xf]
    %v602 = vld [vmem:[%s3 + $0xe0] sm:$0xf]
    %v603 = vld [vmem:[%s3 + $0xe4] sm:$0xf]
    %v604 = vld [vmem:[%s3 + $0xe8] sm:$0xf]
    %v605 = vld [vmem:[%s3 + $0xec] sm:$0xf]
    %v606 = vld [vmem:[%s3 + $0xf0] sm:$0xf]
    %v607 = vld [vmem:[%s3 + $0xf4] sm:$0xf]
    %v608 = vld [vmem:[%s3 + $0xf8] sm:$0xf]
    %v609 = vld [vmem:[%s3 + $0xfc] sm:$0xf]
    %v610 = vld [vmem:[%s4] sm:$0x1]
    %v612 = vperm.slane %v610, 0
    %v678 = vunpack.c.l.b16 %v546
    %v679 = vunpack.c.l.b16 %v547
    %v680 = vunpack.c.l.b16 %v548
    %v681 = vunpack.c.l.b16 %v549
    %v682 = vunpack.c.l.b16 %v550
    %v683 = vunpack.c.l.b16 %v551
    %v684 = vunpack.c.l.b16 %v552
    %v685 = vunpack.c.l.b16 %v553
    %v686 = vunpack.c.l.b16 %v554
    %v687 = vunpack.c.l.b16 %v555
    %v688 = vunpack.c.l.b16 %v556
    %v689 = vunpack.c.l.b16 %v557
    %v690 = vunpack.c.l.b16 %v558
    %v691 = vunpack.c.l.b16 %v559
    %v692 = vunpack.c.l.b16 %v560
    %v693 = vunpack.c.l.b16 %v561
    %v694 = vunpack.c.l.b16 %v562
    %v695 = vunpack.c.l.b16 %v563
    %v696 = vunpack.c.l.b16 %v564
    %v697 = vunpack.c.l.b16 %v565
    %v698 = vunpack.c.l.b16 %v566
    %v699 = vunpack.c.l.b16 %v567
    %v700 = vunpack.c.l.b16 %v568
    %v701 = vunpack.c.l.b16 %v569
    %v702 = vunpack.c.l.b16 %v570
    %v703 = vunpack.c.l.b16 %v571
    %v704 = vunpack.c.l.b16 %v572
    %v705 = vunpack.c.l.b16 %v573
    %v706 = vunpack.c.l.b16 %v574
    %v707 = vunpack.c.l.b16 %v575
    %v708 = vunpack.c.l.b16 %v576
    %v709 = vunpack.c.l.b16 %v577
    %v710 = vunpack.c.l.b16 %v578
    %v711 = vunpack.c.l.b16 %v579
    %v712 = vunpack.c.l.b16 %v580
    %v713 = vunpack.c.l.b16 %v581
    %v714 = vunpack.c.l.b16 %v582
    %v715 = vunpack.c.l.b16 %v583
    %v716 = vunpack.c.l.b16 %v584
    %v717 = vunpack.c.l.b16 %v585
    %v718 = vunpack.c.l.b16 %v586
    %v719 = vunpack.c.l.b16 %v587
    %v720 = vunpack.c.l.b16 %v588
    %v721 = vunpack.c.l.b16 %v589
    %v722 = vunpack.c.l.b16 %v590
    %v723 = vunpack.c.l.b16 %v591
    %v724 = vunpack.c.l.b16 %v592
    %v725 = vunpack.c.l.b16 %v593
    %v726 = vunpack.c.l.b16 %v594
    %v727 = vunpack.c.l.b16 %v595
    %v728 = vunpack.c.l.b16 %v596
    %v729 = vunpack.c.l.b16 %v597
    %v730 = vunpack.c.l.b16 %v598
    %v731 = vunpack.c.l.b16 %v599
    %v732 = vunpack.c.l.b16 %v600
    %v733 = vunpack.c.l.b16 %v601
    %v734 = vunpack.c.l.b16 %v602
    %v735 = vunpack.c.l.b16 %v603
    %v736 = vunpack.c.l.b16 %v604
    %v737 = vunpack.c.l.b16 %v605
    %v738 = vunpack.c.l.b16 %v606
    %v739 = vunpack.c.l.b16 %v607
    %v740 = vunpack.c.l.b16 %v608
    %v741 = vunpack.c.l.b16 %v609
    %v742 = vpack.c.b16 %v679, %v678
    %v743 = vpack.c.b16 %v681, %v680
    %v744 = vpack.c.b16 %v683, %v682
    %v745 = vpack.c.b16 %v685, %v684
    %v746 = vpack.c.b16 %v687, %v686
    %v747 = vpack.c.b16 %v689, %v688
    %v748 = vpack.c.b16 %v691, %v690
    %v749 = vpack.c.b16 %v693, %v692
    %v750 = vpack.c.b16 %v695, %v694
    %v751 = vpack.c.b16 %v697, %v696
    %v752 = vpack.c.b16 %v699, %v698
    %v753 = vpack.c.b16 %v701, %v700
    %v754 = vpack.c.b16 %v703, %v702
    %v755 = vpack.c.b16 %v705, %v704
    %v756 = vpack.c.b16 %v707, %v706
    %v757 = vpack.c.b16 %v709, %v708
    %v758 = vpack.c.b16 %v711, %v710
    %v759 = vpack.c.b16 %v713, %v712
    %v760 = vpack.c.b16 %v715, %v714
    %v761 = vpack.c.b16 %v717, %v716
    %v762 = vpack.c.b16 %v719, %v718
    %v763 = vpack.c.b16 %v721, %v720
    %v764 = vpack.c.b16 %v723, %v722
    %v765 = vpack.c.b16 %v725, %v724
    %v766 = vpack.c.b16 %v727, %v726
    %v767 = vpack.c.b16 %v729, %v728
    %v768 = vpack.c.b16 %v731, %v730
    %v769 = vpack.c.b16 %v733, %v732
    %v770 = vpack.c.b16 %v735, %v734
    %v771 = vpack.c.b16 %v737, %v736
    %v772 = vpack.c.b16 %v739, %v738
    %v773 = vpack.c.b16 %v741, %v740
    %806 = vmatpush.bf16.msra.mxu0 %v749
    %807 = vmatpush.bf16.msra.mxu0 %v748
    %808 = vmatpush.bf16.msra.mxu0 %v747
    %809 = vmatpush.bf16.msra.mxu0 %v746
    %810 = vmatpush.bf16.msra.mxu0 %v745
    %811 = vmatpush.bf16.msra.mxu0 %v744
    %812 = vmatpush.bf16.msra.mxu0 %v743
    %813 = vmatpush.bf16.msra.mxu0 %v742
    %814 = vmatmul.bf16.gmra.mxu0 %v542
    %v815 = vpop.f32.mrf.mxu0
    %v816 = vadd.f32 %v612, %v815
    %v817 = vpop.f32.mrf.mxu0
    %818 = vdwg.mxu0
    %819 = vmatpush.bf16.msra.mxu0 %v757
    %820 = vmatpush.bf16.msra.mxu0 %v756
    %821 = vmatpush.bf16.msra.mxu0 %v755
    %822 = vmatpush.bf16.msra.mxu0 %v754
    %823 = vmatpush.bf16.msra.mxu0 %v753
    %824 = vmatpush.bf16.msra.mxu0 %v752
    %825 = vmatpush.bf16.msra.mxu0 %v751
    %826 = vmatpush.bf16.msra.mxu0 %v750
    %827 = vmatmul.bf16.gmra.mxu0 %v543
    %v828 = vpop.f32.mrf.mxu0
    %v829 = vadd.f32 %v816, %v828
    %v830 = vpop.f32.mrf.mxu0
    %831 = vdwg.mxu0
    %832 = vmatpush.bf16.msra.mxu0 %v765
    %833 = vmatpush.bf16.msra.mxu0 %v764
    %834 = vmatpush.bf16.msra.mxu0 %v763
    %835 = vmatpush.bf16.msra.mxu0 %v762
    %836 = vmatpush.bf16.msra.mxu0 %v761
    %837 = vmatpush.bf16.msra.mxu0 %v760
    %838 = vmatpush.bf16.msra.mxu0 %v759
    %839 = vmatpush.bf16.msra.mxu0 %v758
    %840 = vmatmul.bf16.gmra.mxu0 %v544
    %v841 = vpop.f32.mrf.mxu0
    %v842 = vadd.f32 %v829, %v841
    %v843 = vpop.f32.mrf.mxu0
    %844 = vdwg.mxu0
    %845 = vmatpush.bf16.msra.mxu0 %v773
    %846 = vmatpush.bf16.msra.mxu0 %v772
    %847 = vmatpush.bf16.msra.mxu0 %v771
    %848 = vmatpush.bf16.msra.mxu0 %v770
    %849 = vmatpush.bf16.msra.mxu0 %v769
    %850 = vmatpush.bf16.msra.mxu0 %v768
    %851 = vmatpush.bf16.msra.mxu0 %v767
    %852 = vmatpush.bf16.msra.mxu0 %v766
    %853 = vmatmul.bf16.gmra.mxu0 %v545
    %v854 = vpop.f32.mrf.mxu0
    %v855 = vadd.f32 %v842, %v854
    %v856 = vpop.f32.mrf.mxu0
    %857 = vdwg.mxu0
    %858 = vst [vmem:[%s5] sm:$0xff] %v855
    // Predicated region
    $region26: #{_run_mlp.1} parent=1 // pred_check
      _
    $region27: #{_run_mlp.1} parent=1 // pred_check_branch
      %860 = sbr.rel (0) target = $region29
    $region28: #{_run_mlp.1} parent=1 // pred_region
      _
    $region29: #{_run_mlp.1} parent=1 // pred_fallthru
      _
    // Predicated region
    $region30: #{_run_mlp.1} parent=1 // pred_check
      _
    $region31: #{_run_mlp.1} parent=1 // pred_check_branch
      %862 = sbr.rel (0) target = $region33
    $region32: #{_run_mlp.1} parent=1 // pred_region
      _
    $region33: #{_run_mlp.1} parent=1 // pred_fallthru
      _
    %863 = vsyncpa [#allocation3], 1

</llo_original>
